<compile_context>
chip_gen: v6e
topology: v6e:2x2x1
jax: 0.10.0
libtpu: 0.0.40
codegen_flags: <defaults>
</compile_context>

<pallas_src>
import jax
import jax.numpy as jnp
from jax.experimental import pallas as pl
from jax.experimental.pallas import tpu as pltpu

# ------------------------- problem sizes (small, synthetic) ------------------
B, N, C = 2, 8, 32          # batch, sequence length, embedding dim
H = 4                       # num_heads
HD = C // H                 # head dim
MLP_RATIO = 4.0
HIDDEN = int(C * MLP_RATIO)
EPS = 1e-5                  # nn.LayerNorm default
SCALE = HD ** (-0.5)
INV_SQRT2 = 0.7071067811865476


def _layernorm(x, gamma, beta):
    mu = jnp.mean(x, axis=-1, keepdims=True)
    var = jnp.mean((x - mu) ** 2, axis=-1, keepdims=True)
    return (x - mu) * jax.lax.rsqrt(var + EPS) * gamma + beta


def block_kernel(x_ref,
                 g1_ref, b1_ref,
                 wqkv_ref, bqkv_ref, wproj_ref, bproj_ref,
                 g2_ref, b2_ref,
                 w1_ref, bfc1_ref, w2_ref, bfc2_ref,
                 o_ref,
                 att_ref):
    # TODO(synk): Dropout / DropPath / return_attention are omitted — all are
    # identities / unused in the eval forward pass of this Block.
    # One grid step == one sequence tile of N tokens.
    x = x_ref[...].astype(jnp.float32)                      # (N, C) f32

    # ---------------- norm1 + fused multi-head self-attention ----------------
    xn = _layernorm(x, g1_ref[...], b1_ref[...])            # (N, C) f32
    qkv = jnp.dot(xn.astype(jnp.bfloat16), wqkv_ref[...],   # bf16 x bf16 -> f32 acc
                  preferred_element_type=jnp.float32) + bqkv_ref[...]   # (N, 3C)
    qkv_bf = qkv.astype(jnp.bfloat16)

    def split_heads(t2d):
        # (N, C) -> (H, N, HD): lane slices stacked along a new leading axis
        # (leading-dim concat is layout-free; no lane reshapes needed).
        return jnp.stack([t2d[:, h * HD:(h + 1) * HD] for h in range(H)], axis=0)

    qh = split_heads(qkv_bf[:, 0:C])          # qk scale pre-folded into wqkv/bqkv
    kh = split_heads(qkv_bf[:, C:2 * C])
    vh = split_heads(qkv_bf[:, 2 * C:3 * C])

    s = jnp.einsum('hqd,hkd->hqk', qh, kh,
                   preferred_element_type=jnp.float32)      # (H, N, N) f32
    s = s - jnp.max(s, axis=-1, keepdims=True)              # stable softmax
    p = jnp.exp(s)
    p = p * pl.reciprocal(jnp.sum(p, axis=-1, keepdims=True), approx=True)  # EUP
    oh = jnp.einsum('hqk,hkd->hqd', p.astype(jnp.bfloat16), vh,
                    preferred_element_type=jnp.float32)     # (H, N, HD) f32

    # Merge heads lane-wise through a VMEM scratch, then ONE K=C projection dot.
    for h in range(H):                                      # static, H tiny stores
        att_ref[:, h * HD:(h + 1) * HD] = oh[h]
    y = jnp.dot(att_ref[...].astype(jnp.bfloat16), wproj_ref[...],
                preferred_element_type=jnp.float32) + bproj_ref[...]
    x = x + y                                               # residual 1

    # ---------------- norm2 + MLP (fc1 -> GELU -> fc2) ------------------------
    xn2 = _layernorm(x, g2_ref[...], b2_ref[...])
    h1 = jnp.dot(xn2.astype(jnp.bfloat16), w1_ref[...],
                 preferred_element_type=jnp.float32) + bfc1_ref[...]    # (N, HIDDEN)
    # Exact (erf) GELU to match nn.GELU; tanh/exp approx would route to the EUP
    # slot and hide under MXU work at real sizes if numerics allow.
    h1 = 0.5 * h1 * (1.0 + jax.lax.erf(h1 * INV_SQRT2))
    h2 = jnp.dot(h1.astype(jnp.bfloat16), w2_ref[...],
                 preferred_element_type=jnp.float32) + bfc2_ref[...]
    x = x + h2                                              # residual 2

    # Output lanes are C = 32 (<128) at toy size -> masked stores; real ViT C
    # (768/1024) is already a multiple of 128, keep it lane-dense when scaling.
    o_ref[...] = x.astype(o_ref.dtype)


def vit_block(x, kparams):
    """kparams: output of prepare_params (bf16 weights, scale-folded qkv)."""
    b_, n_, c_ = x.shape
    x2 = x.reshape(b_ * n_, c_)          # tokens on the matmul M dimension
    operands = (x2,) + tuple(kparams)

    def resident(a):
        # Constant block index: fetched once, stays VMEM-resident across grid
        # steps (no re-DMA). At ViT-B/L on v7x (64 MiB VMEM) these would be
        # single-buffered (pl.Buffered(1)) or K-streamed instead.
        return pl.BlockSpec(a.shape, lambda i: (0, 0))

    out = pl.pallas_call(
        block_kernel,
        out_shape=jax.ShapeDtypeStruct((b_ * n_, c_), x.dtype),
        grid_spec=pltpu.PrefetchScalarGridSpec(
            num_scalar_prefetch=0,
            grid=(b_,),      # one step per sequence; pipelined activation tiles
            in_specs=[pl.BlockSpec((n_, c_), lambda i: (i, 0))]
                     + [resident(a) for a in kparams],
            out_specs=pl.BlockSpec((n_, c_), lambda i: (i, 0)),
            scratch_shapes=[pltpu.VMEM((n_, c_), jnp.float32)],   # head-merge staging
        ),
        compiler_params=pltpu.CompilerParams(
            dimension_semantics=("parallel",),        # shards across v7x's 2 TCs
            vmem_limit_bytes=64 * 1024 * 1024),
    )(*operands)
    return out.reshape(b_, n_, c_)


def init_params(key):
    """f32 parameters matching the PyTorch module (qkv_bias=True)."""
    ks = jax.random.split(key, 8)
    std = 0.02
    g1 = jnp.ones((1, C), jnp.float32)
    b1 = jnp.zeros((1, C), jnp.float32)
    g2 = jnp.ones((1, C), jnp.float32)
    b2 = jnp.zeros((1, C), jnp.float32)
    wqkv = std * jax.random.normal(ks[0], (C, 3 * C), jnp.float32)   # (in, out)
    bqkv = std * jax.random.normal(ks[1], (1, 3 * C), jnp.float32)
    wproj = std * jax.random.normal(ks[2], (C, C), jnp.float32)
    bproj = std * jax.random.normal(ks[3], (1, C), jnp.float32)
    w1 = std * jax.random.normal(ks[4], (C, HIDDEN), jnp.float32)
    bfc1 = std * jax.random.normal(ks[5], (1, HIDDEN), jnp.float32)
    w2 = std * jax.random.normal(ks[6], (HIDDEN, C), jnp.float32)
    bfc2 = std * jax.random.normal(ks[7], (1, C), jnp.float32)
    return (g1, b1, wqkv, bqkv, wproj, bproj, g2, b2, w1, bfc1, w2, bfc2)


def prepare_params(params):
    """One-time, host-side kernel parameter prep:
       * fold the qk scale into the q columns of wqkv / bqkv,
       * cast matmul weights to bf16 (MXU-native; f32 accumulation in-kernel).
       Biases / LayerNorm affines stay f32 (added post-accumulation)."""
    (g1, b1, wqkv, bqkv, wproj, bproj, g2, b2, w1, bfc1, w2, bfc2) = params
    col_scale = jnp.concatenate([jnp.full((C,), SCALE, jnp.float32),
                                 jnp.ones((2 * C,), jnp.float32)])[None, :]
    wqkv_s = wqkv * col_scale
    bqkv_s = bqkv * col_scale
    bf = jnp.bfloat16
    return (g1, b1,
            wqkv_s.astype(bf), bqkv_s, wproj.astype(bf), bproj,
            g2, b2,
            w1.astype(bf), bfc1, w2.astype(bf), bfc2)


def block_reference(x, params):
    """Pure-JAX f32 reference matching the PyTorch Block forward (eval mode)."""
    (g1, b1, wqkv, bqkv, wproj, bproj, g2, b2, w1, bfc1, w2, bfc2) = params
    b_, n_, c_ = x.shape

    def ln(t, g, bb):
        mu = jnp.mean(t, axis=-1, keepdims=True)
        var = jnp.mean((t - mu) ** 2, axis=-1, keepdims=True)
        return (t - mu) * jax.lax.rsqrt(var + EPS) * g + bb

    xn = ln(x, g1, b1)
    qkv = xn @ wqkv + bqkv
    qkv = qkv.reshape(b_, n_, 3, H, HD).transpose(2, 0, 3, 1, 4)   # (3, B, H, N, HD)
    q, k, v = qkv[0], qkv[1], qkv[2]
    attn = (q @ jnp.swapaxes(k, -2, -1)) * SCALE
    attn = jax.nn.softmax(attn, axis=-1)
    y = (attn @ v).transpose(0, 2, 1, 3).reshape(b_, n_, c_)
    y = y @ wproj + bproj
    x = x + y
    xn2 = ln(x, g2, b2)
    h1 = xn2 @ w1 + bfc1
    h1 = 0.5 * h1 * (1.0 + jax.lax.erf(h1 * INV_SQRT2))
    x = x + (h1 @ w2 + bfc2)
    return x


if __name__ == "__main__":
    key = jax.random.PRNGKey(0)
    kx, kp = jax.random.split(key)
    x = jax.random.normal(kx, (B, N, C), jnp.float32)
    params = init_params(kp)           # f32 "PyTorch" parameters
    kparams = prepare_params(params)   # one-time prep: scale fold + bf16 weights

    out = jax.block_until_ready(vit_block(x, kparams))
    assert out.shape == (B, N, C)
    assert bool(jnp.all(jnp.isfinite(out)))

    ref = block_reference(x, params)
    max_err = float(jnp.max(jnp.abs(out - ref)))
    # tolerance covers bf16 matmul operands (f32 accumulation) + approx
    # reciprocal in the softmax; output is dominated by the exact f32 residual.
    assert bool(jnp.allclose(out, ref, rtol=1e-2, atol=1e-2)), max_err
    print("KERNEL_OK")
</pallas_src>

<mosaic_0001>
module attributes {stable_mosaic.version = 11 : i64} {
  func.func @block_kernel(%arg0: i32, %arg1: memref<8x32xf32, #tpu.memory_space<vmem>>, %arg2: memref<1x32xf32, #tpu.memory_space<vmem>>, %arg3: memref<1x32xf32, #tpu.memory_space<vmem>>, %arg4: memref<32x96xbf16, #tpu.memory_space<vmem>>, %arg5: memref<1x96xf32, #tpu.memory_space<vmem>>, %arg6: memref<32x32xbf16, #tpu.memory_space<vmem>>, %arg7: memref<1x32xf32, #tpu.memory_space<vmem>>, %arg8: memref<1x32xf32, #tpu.memory_space<vmem>>, %arg9: memref<1x32xf32, #tpu.memory_space<vmem>>, %arg10: memref<32x128xbf16, #tpu.memory_space<vmem>>, %arg11: memref<1x128xf32, #tpu.memory_space<vmem>>, %arg12: memref<128x32xbf16, #tpu.memory_space<vmem>>, %arg13: memref<1x32xf32, #tpu.memory_space<vmem>>, %arg14: memref<8x32xf32, #tpu.memory_space<vmem>>, %arg15: memref<8x32xf32, #tpu.memory_space<vmem>>) attributes {dimension_semantics = [#tpu.dimension_semantics<parallel>], iteration_bounds = array<i64: 2>, scalar_prefetch = 0 : i64, scratch_operands = 1 : i64, tpu.core_type = #tpu.core_type<tc>, window_params = [{transform_indices = @transform_0, window_bounds = array<i64: 8, 32>}, {pipeline_mode = #tpu.pipeline_mode<synchronous>, transform_indices = @transform_1, window_bounds = array<i64: 1, 32>}, {pipeline_mode = #tpu.pipeline_mode<synchronous>, transform_indices = @transform_2, window_bounds = array<i64: 1, 32>}, {pipeline_mode = #tpu.pipeline_mode<synchronous>, transform_indices = @transform_3, window_bounds = array<i64: 32, 96>}, {pipeline_mode = #tpu.pipeline_mode<synchronous>, transform_indices = @transform_4, window_bounds = array<i64: 1, 96>}, {pipeline_mode = #tpu.pipeline_mode<synchronous>, transform_indices = @transform_5, window_bounds = array<i64: 32, 32>}, {pipeline_mode = #tpu.pipeline_mode<synchronous>, transform_indices = @transform_6, window_bounds = array<i64: 1, 32>}, {pipeline_mode = #tpu.pipeline_mode<synchronous>, transform_indices = @transform_7, window_bounds = array<i64: 1, 32>}, {pipeline_mode = #tpu.pipeline_mode<synchronous>, transform_indices = @transform_8, window_bounds = array<i64: 1, 32>}, {pipeline_mode = #tpu.pipeline_mode<synchronous>, transform_indices = @transform_9, window_bounds = array<i64: 32, 128>}, {pipeline_mode = #tpu.pipeline_mode<synchronous>, transform_indices = @transform_10, window_bounds = array<i64: 1, 128>}, {pipeline_mode = #tpu.pipeline_mode<synchronous>, transform_indices = @transform_11, window_bounds = array<i64: 128, 32>}, {pipeline_mode = #tpu.pipeline_mode<synchronous>, transform_indices = @transform_12, window_bounds = array<i64: 1, 32>}, {transform_indices = @transform_13, window_bounds = array<i64: 8, 32>}]} {
    %c0 = arith.constant 0 : index
    %c0_0 = arith.constant 0 : index
    %0 = vector.load %arg1[%c0, %c0_0] : memref<8x32xf32, #tpu.memory_space<vmem>>, vector<8x32xf32>
    %c0_1 = arith.constant 0 : index
    %c0_2 = arith.constant 0 : index
    %1 = vector.load %arg2[%c0_1, %c0_2] : memref<1x32xf32, #tpu.memory_space<vmem>>, vector<1x32xf32>
    %c0_3 = arith.constant 0 : index
    %c0_4 = arith.constant 0 : index
    %2 = vector.load %arg3[%c0_3, %c0_4] : memref<1x32xf32, #tpu.memory_space<vmem>>, vector<1x32xf32>
    %cst = arith.constant dense<0.000000e+00> : vector<8xf32>
    %3 = vector.multi_reduction <add>, %0, %cst [1] : vector<8x32xf32> to vector<8xf32>
    %4 = vector.shape_cast %3 : vector<8xf32> to vector<8x1xf32>
    %cst_5 = arith.constant 3.200000e+01 : f32
    %5 = vector.broadcast %cst_5 : f32 to vector<8x1xf32>
    %6 = arith.divf %4, %5 : vector<8x1xf32>
    %7 = vector.broadcast %6 : vector<8x1xf32> to vector<8x32xf32>
    %8 = arith.subf %0, %7 : vector<8x32xf32>
    %9 = arith.mulf %8, %8 : vector<8x32xf32>
    %cst_6 = arith.constant dense<0.000000e+00> : vector<8xf32>
    %10 = vector.multi_reduction <add>, %9, %cst_6 [1] : vector<8x32xf32> to vector<8xf32>
    %11 = vector.shape_cast %10 : vector<8xf32> to vector<8x1xf32>
    %cst_7 = arith.constant 3.200000e+01 : f32
    %12 = vector.broadcast %cst_7 : f32 to vector<8x1xf32>
    %13 = arith.divf %11, %12 : vector<8x1xf32>
    %14 = vector.broadcast %6 : vector<8x1xf32> to vector<8x32xf32>
    %15 = arith.subf %0, %14 : vector<8x32xf32>
    %cst_8 = arith.constant 9.99999974E-6 : f32
    %16 = vector.broadcast %cst_8 : f32 to vector<8x1xf32>
    %17 = arith.addf %13, %16 : vector<8x1xf32>
    %18 = math.rsqrt %17 : vector<8x1xf32>
    %19 = vector.broadcast %18 : vector<8x1xf32> to vector<8x32xf32>
    %20 = arith.mulf %15, %19 : vector<8x32xf32>
    %21 = vector.broadcast %1 : vector<1x32xf32> to vector<8x32xf32>
    %22 = arith.mulf %20, %21 : vector<8x32xf32>
    %23 = vector.broadcast %2 : vector<1x32xf32> to vector<8x32xf32>
    %24 = arith.addf %22, %23 : vector<8x32xf32>
    %25 = arith.truncf %24 : vector<8x32xf32> to vector<8x32xbf16>
    %c0_9 = arith.constant 0 : index
    %c0_10 = arith.constant 0 : index
    %26 = vector.load %arg4[%c0_9, %c0_10] : memref<32x96xbf16, #tpu.memory_space<vmem>>, vector<32x96xbf16>
    %cst_11 = arith.constant dense<0.000000e+00> : vector<8x96xf32>
    %27 = tpu.matmul %25, %26, %cst_11 {dimension_numbers = #tpu.dot_dimension_numbers<[1], [0], [0], [1], [0, 0, 1, 1], [], []>} : vector<8x32xbf16>, vector<32x96xbf16>, vector<8x96xf32> -> vector<8x96xf32>
    %c0_12 = arith.constant 0 : index
    %c0_13 = arith.constant 0 : index
    %28 = vector.load %arg5[%c0_12, %c0_13] : memref<1x96xf32, #tpu.memory_space<vmem>>, vector<1x96xf32>
    %29 = vector.broadcast %28 : vector<1x96xf32> to vector<8x96xf32>
    %30 = arith.addf %27, %29 : vector<8x96xf32>
    %31 = arith.truncf %30 : vector<8x96xf32> to vector<8x96xbf16>
    %32 = vector.extract_strided_slice %31 {offsets = [0, 0], sizes = [8, 32], strides = [1, 1]} : vector<8x96xbf16> to vector<8x32xbf16>
    %33 = vector.extract_strided_slice %32 {offsets = [0, 0], sizes = [8, 8], strides = [1, 1]} : vector<8x32xbf16> to vector<8x8xbf16>
    %34 = vector.extract_strided_slice %32 {offsets = [0, 8], sizes = [8, 8], strides = [1, 1]} : vector<8x32xbf16> to vector<8x8xbf16>
    %35 = vector.extract_strided_slice %32 {offsets = [0, 16], sizes = [8, 8], strides = [1, 1]} : vector<8x32xbf16> to vector<8x8xbf16>
    %36 = vector.extract_strided_slice %32 {offsets = [0, 24], sizes = [8, 8], strides = [1, 1]} : vector<8x32xbf16> to vector<8x8xbf16>
    %37 = vector.shape_cast %33 : vector<8x8xbf16> to vector<1x8x8xbf16>
    %38 = vector.shape_cast %34 : vector<8x8xbf16> to vector<1x8x8xbf16>
    %39 = vector.shape_cast %35 : vector<8x8xbf16> to vector<1x8x8xbf16>
    %40 = vector.shape_cast %36 : vector<8x8xbf16> to vector<1x8x8xbf16>
    %41 = tpu.concatenate %37, %38, %39, %40 in 0 : vector<1x8x8xbf16>, vector<1x8x8xbf16>, vector<1x8x8xbf16>, vector<1x8x8xbf16> -> vector<4x8x8xbf16>
    %42 = vector.extract_strided_slice %31 {offsets = [0, 32], sizes = [8, 32], strides = [1, 1]} : vector<8x96xbf16> to vector<8x32xbf16>
    %43 = vector.extract_strided_slice %42 {offsets = [0, 0], sizes = [8, 8], strides = [1, 1]} : vector<8x32xbf16> to vector<8x8xbf16>
    %44 = vector.extract_strided_slice %42 {offsets = [0, 8], sizes = [8, 8], strides = [1, 1]} : vector<8x32xbf16> to vector<8x8xbf16>
    %45 = vector.extract_strided_slice %42 {offsets = [0, 16], sizes = [8, 8], strides = [1, 1]} : vector<8x32xbf16> to vector<8x8xbf16>
    %46 = vector.extract_strided_slice %42 {offsets = [0, 24], sizes = [8, 8], strides = [1, 1]} : vector<8x32xbf16> to vector<8x8xbf16>
    %47 = vector.shape_cast %43 : vector<8x8xbf16> to vector<1x8x8xbf16>
    %48 = vector.shape_cast %44 : vector<8x8xbf16> to vector<1x8x8xbf16>
    %49 = vector.shape_cast %45 : vector<8x8xbf16> to vector<1x8x8xbf16>
    %50 = vector.shape_cast %46 : vector<8x8xbf16> to vector<1x8x8xbf16>
    %51 = tpu.concatenate %47, %48, %49, %50 in 0 : vector<1x8x8xbf16>, vector<1x8x8xbf16>, vector<1x8x8xbf16>, vector<1x8x8xbf16> -> vector<4x8x8xbf16>
    %52 = vector.extract_strided_slice %31 {offsets = [0, 64], sizes = [8, 32], strides = [1, 1]} : vector<8x96xbf16> to vector<8x32xbf16>
    %53 = vector.extract_strided_slice %52 {offsets = [0, 0], sizes = [8, 8], strides = [1, 1]} : vector<8x32xbf16> to vector<8x8xbf16>
    %54 = vector.extract_strided_slice %52 {offsets = [0, 8], sizes = [8, 8], strides = [1, 1]} : vector<8x32xbf16> to vector<8x8xbf16>
    %55 = vector.extract_strided_slice %52 {offsets = [0, 16], sizes = [8, 8], strides = [1, 1]} : vector<8x32xbf16> to vector<8x8xbf16>
    %56 = vector.extract_strided_slice %52 {offsets = [0, 24], sizes = [8, 8], strides = [1, 1]} : vector<8x32xbf16> to vector<8x8xbf16>
    %57 = vector.shape_cast %53 : vector<8x8xbf16> to vector<1x8x8xbf16>
    %58 = vector.shape_cast %54 : vector<8x8xbf16> to vector<1x8x8xbf16>
    %59 = vector.shape_cast %55 : vector<8x8xbf16> to vector<1x8x8xbf16>
    %60 = vector.shape_cast %56 : vector<8x8xbf16> to vector<1x8x8xbf16>
    %61 = tpu.concatenate %57, %58, %59, %60 in 0 : vector<1x8x8xbf16>, vector<1x8x8xbf16>, vector<1x8x8xbf16>, vector<1x8x8xbf16> -> vector<4x8x8xbf16>
    "tpu.trace_start"() <{level = 10 : i32, message = "hqd,hkd->hqk"}> : () -> ()
    %cst_14 = arith.constant dense<0.000000e+00> : vector<4x8x8xf32>
    %62 = tpu.matmul %41, %51, %cst_14 {dimension_numbers = #tpu.dot_dimension_numbers<[2], [2], [1], [1], [0, 0, 0, 1, 1, 1], [0], [0]>} : vector<4x8x8xbf16>, vector<4x8x8xbf16>, vector<4x8x8xf32> -> vector<4x8x8xf32>
    "tpu.trace_stop"() : () -> ()
    %cst_15 = arith.constant dense<0xFF800000> : vector<4x8xf32>
    %63 = vector.multi_reduction <maximumf>, %62, %cst_15 [2] : vector<4x8x8xf32> to vector<4x8xf32>
    %64 = vector.shape_cast %63 : vector<4x8xf32> to vector<4x8x1xf32>
    %65 = vector.broadcast %64 : vector<4x8x1xf32> to vector<4x8x8xf32>
    %66 = arith.subf %62, %65 : vector<4x8x8xf32>
    %67 = math.exp %66 : vector<4x8x8xf32>
    %cst_16 = arith.constant dense<0.000000e+00> : vector<4x8xf32>
    %68 = vector.multi_reduction <add>, %67, %cst_16 [2] : vector<4x8x8xf32> to vector<4x8xf32>
    %69 = vector.shape_cast %68 : vector<4x8xf32> to vector<4x8x1xf32>
    %70 = tpu.reciprocal %69 {approx = true} : vector<4x8x1xf32> -> vector<4x8x1xf32>
    %71 = vector.broadcast %70 : vector<4x8x1xf32> to vector<4x8x8xf32>
    %72 = arith.mulf %67, %71 : vector<4x8x8xf32>
    %73 = arith.truncf %72 : vector<4x8x8xf32> to vector<4x8x8xbf16>
    "tpu.trace_start"() <{level = 10 : i32, message = "hqk,hkd->hqd"}> : () -> ()
    %cst_17 = arith.constant dense<0.000000e+00> : vector<4x8x8xf32>
    %74 = tpu.matmul %73, %61, %cst_17 {dimension_numbers = #tpu.dot_dimension_numbers<[2], [1], [1], [2], [0, 0, 0, 1, 1, 2], [0], [0]>} : vector<4x8x8xbf16>, vector<4x8x8xbf16>, vector<4x8x8xf32> -> vector<4x8x8xf32>
    "tpu.trace_stop"() : () -> ()
    %75 = vector.extract_strided_slice %74 {offsets = [0, 0, 0], sizes = [1, 8, 8], strides = [1, 1, 1]} : vector<4x8x8xf32> to vector<1x8x8xf32>
    %76 = vector.shape_cast %75 : vector<1x8x8xf32> to vector<8x8xf32>
    %c0_18 = arith.constant 0 : index
    %c0_19 = arith.constant 0 : index
    %77 = vector.load %arg15[%c0_18, %c0_19] : memref<8x32xf32, #tpu.memory_space<vmem>>, vector<8x8xf32>
    tpu.vector_store %arg15[%c0_18, %c0_19], %76 {strides = array<i32>} : memref<8x32xf32, #tpu.memory_space<vmem>>, vector<8x8xf32>,
    %78 = vector.extract_strided_slice %74 {offsets = [1, 0, 0], sizes = [1, 8, 8], strides = [1, 1, 1]} : vector<4x8x8xf32> to vector<1x8x8xf32>
    %79 = vector.shape_cast %78 : vector<1x8x8xf32> to vector<8x8xf32>
    %c0_20 = arith.constant 0 : index
    %c8 = arith.constant 8 : index
    %80 = vector.load %arg15[%c0_20, %c8] : memref<8x32xf32, #tpu.memory_space<vmem>>, vector<8x8xf32>
    tpu.vector_store %arg15[%c0_20, %c8], %79 {strides = array<i32>} : memref<8x32xf32, #tpu.memory_space<vmem>>, vector<8x8xf32>,
    %81 = vector.extract_strided_slice %74 {offsets = [2, 0, 0], sizes = [1, 8, 8], strides = [1, 1, 1]} : vector<4x8x8xf32> to vector<1x8x8xf32>
    %82 = vector.shape_cast %81 : vector<1x8x8xf32> to vector<8x8xf32>
    %c0_21 = arith.constant 0 : index
    %c16 = arith.constant 16 : index
    %83 = vector.load %arg15[%c0_21, %c16] : memref<8x32xf32, #tpu.memory_space<vmem>>, vector<8x8xf32>
    tpu.vector_store %arg15[%c0_21, %c16], %82 {strides = array<i32>} : memref<8x32xf32, #tpu.memory_space<vmem>>, vector<8x8xf32>,
    %84 = vector.extract_strided_slice %74 {offsets = [3, 0, 0], sizes = [1, 8, 8], strides = [1, 1, 1]} : vector<4x8x8xf32> to vector<1x8x8xf32>
    %85 = vector.shape_cast %84 : vector<1x8x8xf32> to vector<8x8xf32>
    %c0_22 = arith.constant 0 : index
    %c24 = arith.constant 24 : index
    %86 = vector.load %arg15[%c0_22, %c24] : memref<8x32xf32, #tpu.memory_space<vmem>>, vector<8x8xf32>
    tpu.vector_store %arg15[%c0_22, %c24], %85 {strides = array<i32>} : memref<8x32xf32, #tpu.memory_space<vmem>>, vector<8x8xf32>,
    %c0_23 = arith.constant 0 : index
    %c0_24 = arith.constant 0 : index
    %87 = vector.load %arg15[%c0_23, %c0_24] : memref<8x32xf32, #tpu.memory_space<vmem>>, vector<8x32xf32>
    %88 = arith.truncf %87 : vector<8x32xf32> to vector<8x32xbf16>
    %c0_25 = arith.constant 0 : index
    %c0_26 = arith.constant 0 : index
    %89 = vector.load %arg6[%c0_25, %c0_26] : memref<32x32xbf16, #tpu.memory_space<vmem>>, vector<32x32xbf16>
    %cst_27 = arith.constant dense<0.000000e+00> : vector<8x32xf32>
    %90 = tpu.matmul %88, %89, %cst_27 {dimension_numbers = #tpu.dot_dimension_numbers<[1], [0], [0], [1], [0, 0, 1, 1], [], []>} : vector<8x32xbf16>, vector<32x32xbf16>, vector<8x32xf32> -> vector<8x32xf32>
    %c0_28 = arith.constant 0 : index
    %c0_29 = arith.constant 0 : index
    %91 = vector.load %arg7[%c0_28, %c0_29] : memref<1x32xf32, #tpu.memory_space<vmem>>, vector<1x32xf32>
    %92 = vector.broadcast %91 : vector<1x32xf32> to vector<8x32xf32>
    %93 = arith.addf %90, %92 : vector<8x32xf32>
    %94 = arith.addf %0, %93 : vector<8x32xf32>
    %c0_30 = arith.constant 0 : index
    %c0_31 = arith.constant 0 : index
    %95 = vector.load %arg8[%c0_30, %c0_31] : memref<1x32xf32, #tpu.memory_space<vmem>>, vector<1x32xf32>
    %c0_32 = arith.constant 0 : index
    %c0_33 = arith.constant 0 : index
    %96 = vector.load %arg9[%c0_32, %c0_33] : memref<1x32xf32, #tpu.memory_space<vmem>>, vector<1x32xf32>
    %cst_34 = arith.constant dense<0.000000e+00> : vector<8xf32>
    %97 = vector.multi_reduction <add>, %94, %cst_34 [1] : vector<8x32xf32> to vector<8xf32>
    %98 = vector.shape_cast %97 : vector<8xf32> to vector<8x1xf32>
    %cst_35 = arith.constant 3.200000e+01 : f32
    %99 = vector.broadcast %cst_35 : f32 to vector<8x1xf32>
    %100 = arith.divf %98, %99 : vector<8x1xf32>
    %101 = vector.broadcast %100 : vector<8x1xf32> to vector<8x32xf32>
    %102 = arith.subf %94, %101 : vector<8x32xf32>
    %103 = arith.mulf %102, %102 : vector<8x32xf32>
    %cst_36 = arith.constant dense<0.000000e+00> : vector<8xf32>
    %104 = vector.multi_reduction <add>, %103, %cst_36 [1] : vector<8x32xf32> to vector<8xf32>
    %105 = vector.shape_cast %104 : vector<8xf32> to vector<8x1xf32>
    %cst_37 = arith.constant 3.200000e+01 : f32
    %106 = vector.broadcast %cst_37 : f32 to vector<8x1xf32>
    %107 = arith.divf %105, %106 : vector<8x1xf32>
    %108 = vector.broadcast %100 : vector<8x1xf32> to vector<8x32xf32>
    %109 = arith.subf %94, %108 : vector<8x32xf32>
    %cst_38 = arith.constant 9.99999974E-6 : f32
    %110 = vector.broadcast %cst_38 : f32 to vector<8x1xf32>
    %111 = arith.addf %107, %110 : vector<8x1xf32>
    %112 = math.rsqrt %111 : vector<8x1xf32>
    %113 = vector.broadcast %112 : vector<8x1xf32> to vector<8x32xf32>
    %114 = arith.mulf %109, %113 : vector<8x32xf32>
    %115 = vector.broadcast %95 : vector<1x32xf32> to vector<8x32xf32>
    %116 = arith.mulf %114, %115 : vector<8x32xf32>
    %117 = vector.broadcast %96 : vector<1x32xf32> to vector<8x32xf32>
    %118 = arith.addf %116, %117 : vector<8x32xf32>
    %119 = arith.truncf %118 : vector<8x32xf32> to vector<8x32xbf16>
    %c0_39 = arith.constant 0 : index
    %c0_40 = arith.constant 0 : index
    %120 = vector.load %arg10[%c0_39, %c0_40] : memref<32x128xbf16, #tpu.memory_space<vmem>>, vector<32x128xbf16>
    %cst_41 = arith.constant dense<0.000000e+00> : vector<8x128xf32>
    %121 = tpu.matmul %119, %120, %cst_41 {dimension_numbers = #tpu.dot_dimension_numbers<[1], [0], [0], [1], [0, 0, 1, 1], [], []>} : vector<8x32xbf16>, vector<32x128xbf16>, vector<8x128xf32> -> vector<8x128xf32>
    %c0_42 = arith.constant 0 : index
    %c0_43 = arith.constant 0 : index
    %122 = vector.load %arg11[%c0_42, %c0_43] : memref<1x128xf32, #tpu.memory_space<vmem>>, vector<1x128xf32>
    %123 = vector.broadcast %122 : vector<1x128xf32> to vector<8x128xf32>
    %124 = arith.addf %121, %123 : vector<8x128xf32>
    %cst_44 = arith.constant 5.000000e-01 : f32
    %125 = vector.broadcast %cst_44 : f32 to vector<8x128xf32>
    %126 = arith.mulf %125, %124 : vector<8x128xf32>
    %cst_45 = arith.constant 0.707106769 : f32
    %127 = vector.broadcast %cst_45 : f32 to vector<8x128xf32>
    %128 = arith.mulf %124, %127 : vector<8x128xf32>
    %129 = math.erf %128 : vector<8x128xf32>
    %cst_46 = arith.constant 1.000000e+00 : f32
    %130 = vector.broadcast %cst_46 : f32 to vector<8x128xf32>
    %131 = arith.addf %130, %129 : vector<8x128xf32>
    %132 = arith.mulf %126, %131 : vector<8x128xf32>
    %133 = arith.truncf %132 : vector<8x128xf32> to vector<8x128xbf16>
    %c0_47 = arith.constant 0 : index
    %c0_48 = arith.constant 0 : index
    %134 = vector.load %arg12[%c0_47, %c0_48] : memref<128x32xbf16, #tpu.memory_space<vmem>>, vector<128x32xbf16>
    %cst_49 = arith.constant dense<0.000000e+00> : vector<8x32xf32>
    %135 = tpu.matmul %133, %134, %cst_49 {dimension_numbers = #tpu.dot_dimension_numbers<[1], [0], [0], [1], [0, 0, 1, 1], [], []>} : vector<8x128xbf16>, vector<128x32xbf16>, vector<8x32xf32> -> vector<8x32xf32>
    %c0_50 = arith.constant 0 : index
    %c0_51 = arith.constant 0 : index
    %136 = vector.load %arg13[%c0_50, %c0_51] : memref<1x32xf32, #tpu.memory_space<vmem>>, vector<1x32xf32>
    %137 = vector.broadcast %136 : vector<1x32xf32> to vector<8x32xf32>
    %138 = arith.addf %135, %137 : vector<8x32xf32>
    %139 = arith.addf %94, %138 : vector<8x32xf32>
    %c0_52 = arith.constant 0 : index
    %c0_53 = arith.constant 0 : index
    %140 = vector.load %arg14[%c0_52, %c0_53] : memref<8x32xf32, #tpu.memory_space<vmem>>, vector<8x32xf32>
    tpu.vector_store %arg14[%c0_52, %c0_53], %139 {strides = array<i32>} : memref<8x32xf32, #tpu.memory_space<vmem>>, vector<8x32xf32>,
    return
  }
  func.func @transform_0(%arg0: i32) -> (i32, i32) {
    %c0_i32 = arith.constant 0 : i32
    %c0_i32_0 = arith.constant 0 : i32
    return %arg0, %c0_i32 : i32, i32
  }
  func.func @transform_1(%arg0: i32) -> (i32, i32) {
    %c0_i32 = arith.constant 0 : i32
    %c0_i32_0 = arith.constant 0 : i32
    %c0_i32_1 = arith.constant 0 : i32
    return %c0_i32, %c0_i32_0 : i32, i32
  }
  func.func @transform_2(%arg0: i32) -> (i32, i32) {
    %c0_i32 = arith.constant 0 : i32
    %c0_i32_0 = arith.constant 0 : i32
    %c0_i32_1 = arith.constant 0 : i32
    return %c0_i32, %c0_i32_0 : i32, i32
  }
  func.func @transform_3(%arg0: i32) -> (i32, i32) {
    %c0_i32 = arith.constant 0 : i32
    %c0_i32_0 = arith.constant 0 : i32
    %c0_i32_1 = arith.constant 0 : i32
    return %c0_i32, %c0_i32_0 : i32, i32
  }
  func.func @transform_4(%arg0: i32) -> (i32, i32) {
    %c0_i32 = arith.constant 0 : i32
    %c0_i32_0 = arith.constant 0 : i32
    %c0_i32_1 = arith.constant 0 : i32
    return %c0_i32, %c0_i32_0 : i32, i32
  }
  func.func @transform_5(%arg0: i32) -> (i32, i32) {
    %c0_i32 = arith.constant 0 : i32
    %c0_i32_0 = arith.constant 0 : i32
    %c0_i32_1 = arith.constant 0 : i32
    return %c0_i32, %c0_i32_0 : i32, i32
  }
  func.func @transform_6(%arg0: i32) -> (i32, i32) {
    %c0_i32 = arith.constant 0 : i32
    %c0_i32_0 = arith.constant 0 : i32
    %c0_i32_1 = arith.constant 0 : i32
    return %c0_i32, %c0_i32_0 : i32, i32
  }
  func.func @transform_7(%arg0: i32) -> (i32, i32) {
    %c0_i32 = arith.constant 0 : i32
    %c0_i32_0 = arith.constant 0 : i32
    %c0_i32_1 = arith.constant 0 : i32
    return %c0_i32, %c0_i32_0 : i32, i32
  }
  func.func @transform_8(%arg0: i32) -> (i32, i32) {
    %c0_i32 = arith.constant 0 : i32
    %c0_i32_0 = arith.constant 0 : i32
    %c0_i32_1 = arith.constant 0 : i32
    return %c0_i32, %c0_i32_0 : i32, i32
  }
  func.func @transform_9(%arg0: i32) -> (i32, i32) {
    %c0_i32 = arith.constant 0 : i32
    %c0_i32_0 = arith.constant 0 : i32
    %c0_i32_1 = arith.constant 0 : i32
    return %c0_i32, %c0_i32_0 : i32, i32
  }
  func.func @transform_10(%arg0: i32) -> (i32, i32) {
    %c0_i32 = arith.constant 0 : i32
    %c0_i32_0 = arith.constant 0 : i32
    %c0_i32_1 = arith.constant 0 : i32
    return %c0_i32, %c0_i32_0 : i32, i32
  }
  func.func @transform_11(%arg0: i32) -> (i32, i32) {
    %c0_i32 = arith.constant 0 : i32
    %c0_i32_0 = arith.constant 0 : i32
    %c0_i32_1 = arith.constant 0 : i32
    return %c0_i32, %c0_i32_0 : i32, i32
  }
  func.func @transform_12(%arg0: i32) -> (i32, i32) {
    %c0_i32 = arith.constant 0 : i32
    %c0_i32_0 = arith.constant 0 : i32
    %c0_i32_1 = arith.constant 0 : i32
    return %c0_i32, %c0_i32_0 : i32, i32
  }
  func.func @transform_13(%arg0: i32) -> (i32, i32) {
    %c0_i32 = arith.constant 0 : i32
    %c0_i32_0 = arith.constant 0 : i32
    return %arg0, %c0_i32 : i32, i32
  }
}

</mosaic_0001>

<llo_original>
// kernel: tpu_custom_call.1
$region0: #{tpu_custom_call.1}
  #allocation0 [shape = 'u32[]', space=smem, size = 0x4, offset = 0x4, fixed_abs, tag = 'smem constant byte address 0x4 - core index']
  #allocation1 [shape = 'u32[144,128]{1,0:T(1,128)}', space=vmem, size = 0x12000, scoped, tag = 'internal scratch']
  #allocation2 [shape = 'f32[8,32]{1,0:T(8,128)}', space=vmem, size = 0x1000, scoped, tag = 'scratch operand']
  %s0 = inlined_call_operand.vmem [shape: f32[16,32], index: 0, kind: input, shape index: {}]
  %s1 = inlined_call_operand.vmem [shape: f32[1,32], index: 1, kind: input, shape index: {}]
  %s2 = inlined_call_operand.vmem [shape: f32[1,32], index: 2, kind: input, shape index: {}]
  %s3 = inlined_call_operand.vmem [shape: bf16[32,96], index: 3, kind: input, shape index: {}]
  %s4 = inlined_call_operand.vmem [shape: f32[1,96], index: 4, kind: input, shape index: {}]
  %s5 = inlined_call_operand.vmem [shape: bf16[32,32], index: 5, kind: input, shape index: {}]
  %s6 = inlined_call_operand.vmem [shape: f32[1,32], index: 6, kind: input, shape index: {}]
  %s7 = inlined_call_operand.vmem [shape: f32[1,32], index: 7, kind: input, shape index: {}]
  %s8 = inlined_call_operand.vmem [shape: f32[1,32], index: 8, kind: input, shape index: {}]
  %s9 = inlined_call_operand.vmem [shape: bf16[32,128], index: 9, kind: input, shape index: {}]
  %s10 = inlined_call_operand.vmem [shape: f32[1,128], index: 10, kind: input, shape index: {}]
  %s11 = inlined_call_operand.vmem [shape: bf16[128,32], index: 11, kind: input, shape index: {}]
  %s12 = inlined_call_operand.vmem [shape: f32[1,32], index: 12, kind: input, shape index: {}]
  %s13 = inlined_call_operand.hbm [shape: f32[16,32], index: 13, kind: output, shape index: {}]
  %s14 = sld [smem:[#allocation0]]
  $region85: #{tpu_custom_call.1} parent=0
    _
  %s16 = ssub.s32 1, %s14
  %s17 = scalar_select 0, %s16, %s14
  $region1: #{tpu_custom_call.1} parent=0
    #allocation3 [shape = 'u8[8192]{0}', space=vmem, size = 0x2000, scoped, tag = 'output window, operand 0']
    #allocation4 [shape = 's32[2]{0}', space=sflag, size = 0x8, scoped, tag = 'scoped memory for tpu_custom_call.1']
    %18 = vsyncpa [#allocation4], 0
    %s19 = scalar_lea.sflag [#allocation4], 1
    %20 = vsyncpa %s19, 0
    loop: start=0, step=1, limit=4
    $region2: #{tpu_custom_call.1} parent=1 // loop_pre_header
      _
    $region3: #{tpu_custom_call.1} parent=1 // loop_header
      %s22 = sphi 0, %s26
      %p23 = scmp.ge.s32.totalorder %s22, 4
      %s32 = sphi 0, %s34
      %s35 = sphi 0, %s32
      %s36 = sphi 0, %s35
      %s52 = sphi 0, %s36
      %s56 = sphi 0, %s56
      %s58 = sphi 0, %s56
      %s59 = sphi 0, %s58
      %s73 = sphi 0, %s59
      %s77 = sphi 0, %s77
      %s79 = sphi 0, %s77
      %s80 = sphi 0, %s79
      %s94 = sphi 0, %s80
      %s98 = sphi 0, %s98
      %s100 = sphi 0, %s98
      %s101 = sphi 0, %s100
      %s115 = sphi 0, %s101
      %s119 = sphi 0, %s119
      %s121 = sphi 0, %s119
      %s122 = sphi 0, %s121
      %s136 = sphi 0, %s122
      %s140 = sphi 0, %s140
      %s142 = sphi 0, %s140
      %s143 = sphi 0, %s142
      %s157 = sphi 0, %s143
      %s161 = sphi 0, %s161
      %s163 = sphi 0, %s161
      %s164 = sphi 0, %s163
      %s178 = sphi 0, %s164
      %s182 = sphi 0, %s182
      %s184 = sphi 0, %s182
      %s185 = sphi 0, %s184
      %s199 = sphi 0, %s185
      %s203 = sphi 0, %s203
      %s205 = sphi 0, %s203
      %s206 = sphi 0, %s205
      %s220 = sphi 0, %s206
      %s224 = sphi 0, %s224
      %s226 = sphi 0, %s224
      %s227 = sphi 0, %s226
      %s241 = sphi 0, %s227
      %s245 = sphi 0, %s245
      %s247 = sphi 0, %s245
      %s248 = sphi 0, %s247
      %s262 = sphi 0, %s248
      %s266 = sphi 0, %s266
      %s268 = sphi 0, %s266
      %s269 = sphi 0, %s268
      %s283 = sphi 0, %s269
      %s287 = sphi 0, %s287
      %s289 = sphi 0, %s287
      %s290 = sphi 0, %s289
      %s304 = sphi 0, %s290
      %s310 = sphi 0, %s312
      %s313 = sphi 0, %s310
      %s314 = sphi 0, %s313
      %s330 = sphi 0, %s314
    $region4: #{tpu_custom_call.1} parent=1 // loop_header_branch
      %25 = sbr.rel (%p23) target = $region8
    $region5: #{tpu_custom_call.1} parent=1 // loop_body
      %s27 = ssub.s32 %s22, 1
      %s28 = ssub.s32 %s22, 2
      %s29 = sadd.s32 %s22, 1
      %s30 = ssub.s32 %s22, %s29
      %p31 = scmp.eq.s32.totalorder %s30, 0
      %s33 = sadd.s32 %s32, 1
      %s34 = scalar_select %p31, %s32, %s33
      %p37 = pneg %p31
      %p38 = scmp.eq.s32.totalorder %s22, 1
      %p39 = por %p37, %p38
      %p40 = scmp.ne.s32.totalorder %s32, %s35
      %p41 = scmp.eq.s32.totalorder %s22, 0
      %p42 = por %p40, %p41
      %p43 = scmp.ne.s32.totalorder %s32, %s35
      %p44 = scmp.eq.s32.totalorder %s27, 1
      %p45 = por %p43, %p44
      %p46 = scmp.ne.s32.totalorder %s35, %s36
      %p47 = scmp.eq.s32.totalorder %s27, 0
      %p48 = por %p46, %p47
      %p49 = scmp.ne.s32.totalorder %s35, %s36
      %p50 = scmp.eq.s32.totalorder %s28, 1
      %p51 = por %p49, %p50
      %p53 = scmp.ne.s32.totalorder %s36, %s52
      %p54 = scmp.eq.s32.totalorder %s28, 0
      %p55 = por %p53, %p54
      %s57 = sadd.s32 %s56, 1
      %p60 = scmp.eq.s32.totalorder %s22, 1
      %p61 = scmp.ne.s32.totalorder %s56, %s58
      %p62 = scmp.eq.s32.totalorder %s22, 0
      %p63 = por %p61, %p62
      %p64 = scmp.ne.s32.totalorder %s56, %s58
      %p65 = scmp.eq.s32.totalorder %s27, 1
      %p66 = por %p64, %p65
      %p67 = scmp.ne.s32.totalorder %s58, %s59
      %p68 = scmp.eq.s32.totalorder %s27, 0
      %p69 = por %p67, %p68
      %p70 = scmp.ne.s32.totalorder %s58, %s59
      %p71 = scmp.eq.s32.totalorder %s28, 1
      %p72 = por %p70, %p71
      %p74 = scmp.ne.s32.totalorder %s59, %s73
      %p75 = scmp.eq.s32.totalorder %s28, 0
      %p76 = por %p74, %p75
      %s78 = sadd.s32 %s77, 1
      %p81 = scmp.eq.s32.totalorder %s22, 1
      %p82 = scmp.ne.s32.totalorder %s77, %s79
      %p83 = scmp.eq.s32.totalorder %s22, 0
      %p84 = por %p82, %p83
      %p85 = scmp.ne.s32.totalorder %s77, %s79
      %p86 = scmp.eq.s32.totalorder %s27, 1
      %p87 = por %p85, %p86
      %p88 = scmp.ne.s32.totalorder %s79, %s80
      %p89 = scmp.eq.s32.totalorder %s27, 0
      %p90 = por %p88, %p89
      %p91 = scmp.ne.s32.totalorder %s79, %s80
      %p92 = scmp.eq.s32.totalorder %s28, 1
      %p93 = por %p91, %p92
      %p95 = scmp.ne.s32.totalorder %s80, %s94
      %p96 = scmp.eq.s32.totalorder %s28, 0
      %p97 = por %p95, %p96
      %s99 = sadd.s32 %s98, 1
      %p102 = scmp.eq.s32.totalorder %s22, 1
      %p103 = scmp.ne.s32.totalorder %s98, %s100
      %p104 = scmp.eq.s32.totalorder %s22, 0
      %p105 = por %p103, %p104
      %p106 = scmp.ne.s32.totalorder %s98, %s100
      %p107 = scmp.eq.s32.totalorder %s27, 1
      %p108 = por %p106, %p107
      %p109 = scmp.ne.s32.totalorder %s100, %s101
      %p110 = scmp.eq.s32.totalorder %s27, 0
      %p111 = por %p109, %p110
      %p112 = scmp.ne.s32.totalorder %s100, %s101
      %p113 = scmp.eq.s32.totalorder %s28, 1
      %p114 = por %p112, %p113
      %p116 = scmp.ne.s32.totalorder %s101, %s115
      %p117 = scmp.eq.s32.totalorder %s28, 0
      %p118 = por %p116, %p117
      %s120 = sadd.s32 %s119, 1
      %p123 = scmp.eq.s32.totalorder %s22, 1
      %p124 = scmp.ne.s32.totalorder %s119, %s121
      %p125 = scmp.eq.s32.totalorder %s22, 0
      %p126 = por %p124, %p125
      %p127 = scmp.ne.s32.totalorder %s119, %s121
      %p128 = scmp.eq.s32.totalorder %s27, 1
      %p129 = por %p127, %p128
      %p130 = scmp.ne.s32.totalorder %s121, %s122
      %p131 = scmp.eq.s32.totalorder %s27, 0
      %p132 = por %p130, %p131
      %p133 = scmp.ne.s32.totalorder %s121, %s122
      %p134 = scmp.eq.s32.totalorder %s28, 1
      %p135 = por %p133, %p134
      %p137 = scmp.ne.s32.totalorder %s122, %s136
      %p138 = scmp.eq.s32.totalorder %s28, 0
      %p139 = por %p137, %p138
      %s141 = sadd.s32 %s140, 1
      %p144 = scmp.eq.s32.totalorder %s22, 1
      %p145 = scmp.ne.s32.totalorder %s140, %s142
      %p146 = scmp.eq.s32.totalorder %s22, 0
      %p147 = por %p145, %p146
      %p148 = scmp.ne.s32.totalorder %s140, %s142
      %p149 = scmp.eq.s32.totalorder %s27, 1
      %p150 = por %p148, %p149
      %p151 = scmp.ne.s32.totalorder %s142, %s143
      %p152 = scmp.eq.s32.totalorder %s27, 0
      %p153 = por %p151, %p152
      %p154 = scmp.ne.s32.totalorder %s142, %s143
      %p155 = scmp.eq.s32.totalorder %s28, 1
      %p156 = por %p154, %p155
      %p158 = scmp.ne.s32.totalorder %s143, %s157
      %p159 = scmp.eq.s32.totalorder %s28, 0
      %p160 = por %p158, %p159
      %s162 = sadd.s32 %s161, 1
      %p165 = scmp.eq.s32.totalorder %s22, 1
      %p166 = scmp.ne.s32.totalorder %s161, %s163
      %p167 = scmp.eq.s32.totalorder %s22, 0
      %p168 = por %p166, %p167
      %p169 = scmp.ne.s32.totalorder %s161, %s163
      %p170 = scmp.eq.s32.totalorder %s27, 1
      %p171 = por %p169, %p170
      %p172 = scmp.ne.s32.totalorder %s163, %s164
      %p173 = scmp.eq.s32.totalorder %s27, 0
      %p174 = por %p172, %p173
      %p175 = scmp.ne.s32.totalorder %s163, %s164
      %p176 = scmp.eq.s32.totalorder %s28, 1
      %p177 = por %p175, %p176
      %p179 = scmp.ne.s32.totalorder %s164, %s178
      %p180 = scmp.eq.s32.totalorder %s28, 0
      %p181 = por %p179, %p180
      %s183 = sadd.s32 %s182, 1
      %p186 = scmp.eq.s32.totalorder %s22, 1
      %p187 = scmp.ne.s32.totalorder %s182, %s184
      %p188 = scmp.eq.s32.totalorder %s22, 0
      %p189 = por %p187, %p188
      %p190 = scmp.ne.s32.totalorder %s182, %s184
      %p191 = scmp.eq.s32.totalorder %s27, 1
      %p192 = por %p190, %p191
      %p193 = scmp.ne.s32.totalorder %s184, %s185
      %p194 = scmp.eq.s32.totalorder %s27, 0
      %p195 = por %p193, %p194
      %p196 = scmp.ne.s32.totalorder %s184, %s185
      %p197 = scmp.eq.s32.totalorder %s28, 1
      %p198 = por %p196, %p197
      %p200 = scmp.ne.s32.totalorder %s185, %s199
      %p201 = scmp.eq.s32.totalorder %s28, 0
      %p202 = por %p200, %p201
      %s204 = sadd.s32 %s203, 1
      %p207 = scmp.eq.s32.totalorder %s22, 1
      %p208 = scmp.ne.s32.totalorder %s203, %s205
      %p209 = scmp.eq.s32.totalorder %s22, 0
      %p210 = por %p208, %p209
      %p211 = scmp.ne.s32.totalorder %s203, %s205
      %p212 = scmp.eq.s32.totalorder %s27, 1
      %p213 = por %p211, %p212
      %p214 = scmp.ne.s32.totalorder %s205, %s206
      %p215 = scmp.eq.s32.totalorder %s27, 0
      %p216 = por %p214, %p215
      %p217 = scmp.ne.s32.totalorder %s205, %s206
      %p218 = scmp.eq.s32.totalorder %s28, 1
      %p219 = por %p217, %p218
      %p221 = scmp.ne.s32.totalorder %s206, %s220
      %p222 = scmp.eq.s32.totalorder %s28, 0
      %p223 = por %p221, %p222
      %s225 = sadd.s32 %s224, 1
      %p228 = scmp.eq.s32.totalorder %s22, 1
      %p229 = scmp.ne.s32.totalorder %s224, %s226
      %p230 = scmp.eq.s32.totalorder %s22, 0
      %p231 = por %p229, %p230
      %p232 = scmp.ne.s32.totalorder %s224, %s226
      %p233 = scmp.eq.s32.totalorder %s27, 1
      %p234 = por %p232, %p233
      %p235 = scmp.ne.s32.totalorder %s226, %s227
      %p236 = scmp.eq.s32.totalorder %s27, 0
      %p237 = por %p235, %p236
      %p238 = scmp.ne.s32.totalorder %s226, %s227
      %p239 = scmp.eq.s32.totalorder %s28, 1
      %p240 = por %p238, %p239
      %p242 = scmp.ne.s32.totalorder %s227, %s241
      %p243 = scmp.eq.s32.totalorder %s28, 0
      %p244 = por %p242, %p243
      %s246 = sadd.s32 %s245, 1
      %p249 = scmp.eq.s32.totalorder %s22, 1
      %p250 = scmp.ne.s32.totalorder %s245, %s247
      %p251 = scmp.eq.s32.totalorder %s22, 0
      %p252 = por %p250, %p251
      %p253 = scmp.ne.s32.totalorder %s245, %s247
      %p254 = scmp.eq.s32.totalorder %s27, 1
      %p255 = por %p253, %p254
      %p256 = scmp.ne.s32.totalorder %s247, %s248
      %p257 = scmp.eq.s32.totalorder %s27, 0
      %p258 = por %p256, %p257
      %p259 = scmp.ne.s32.totalorder %s247, %s248
      %p260 = scmp.eq.s32.totalorder %s28, 1
      %p261 = por %p259, %p260
      %p263 = scmp.ne.s32.totalorder %s248, %s262
      %p264 = scmp.eq.s32.totalorder %s28, 0
      %p265 = por %p263, %p264
      %s267 = sadd.s32 %s266, 1
      %p270 = scmp.eq.s32.totalorder %s22, 1
      %p271 = scmp.ne.s32.totalorder %s266, %s268
      %p272 = scmp.eq.s32.totalorder %s22, 0
      %p273 = por %p271, %p272
      %p274 = scmp.ne.s32.totalorder %s266, %s268
      %p275 = scmp.eq.s32.totalorder %s27, 1
      %p276 = por %p274, %p275
      %p277 = scmp.ne.s32.totalorder %s268, %s269
      %p278 = scmp.eq.s32.totalorder %s27, 0
      %p279 = por %p277, %p278
      %p280 = scmp.ne.s32.totalorder %s268, %s269
      %p281 = scmp.eq.s32.totalorder %s28, 1
      %p282 = por %p280, %p281
      %p284 = scmp.ne.s32.totalorder %s269, %s283
      %p285 = scmp.eq.s32.totalorder %s28, 0
      %p286 = por %p284, %p285
      %s288 = sadd.s32 %s287, 1
      %p291 = scmp.eq.s32.totalorder %s22, 1
      %p292 = scmp.ne.s32.totalorder %s287, %s289
      %p293 = scmp.eq.s32.totalorder %s22, 0
      %p294 = por %p292, %p293
      %p295 = scmp.ne.s32.totalorder %s287, %s289
      %p296 = scmp.eq.s32.totalorder %s27, 1
      %p297 = por %p295, %p296
      %p298 = scmp.ne.s32.totalorder %s289, %s290
      %p299 = scmp.eq.s32.totalorder %s27, 0
      %p300 = por %p298, %p299
      %p301 = scmp.ne.s32.totalorder %s289, %s290
      %p302 = scmp.eq.s32.totalorder %s28, 1
      %p303 = por %p301, %p302
      %p305 = scmp.ne.s32.totalorder %s290, %s304
      %p306 = scmp.eq.s32.totalorder %s28, 0
      %p307 = por %p305, %p306
      %s308 = ssub.s32 %s22, %s29
      %p309 = scmp.eq.s32.totalorder %s308, 0
      %s311 = sadd.s32 %s310, 1
      %s312 = scalar_select %p309, %s310, %s311
      %p315 = pneg %p309
      %p316 = scmp.eq.s32.totalorder %s22, 1
      %p317 = por %p315, %p316
      %p318 = scmp.ne.s32.totalorder %s310, %s313
      %p319 = scmp.eq.s32.totalorder %s22, 0
      %p320 = por %p318, %p319
      %p321 = scmp.ne.s32.totalorder %s310, %s313
      %p322 = scmp.eq.s32.totalorder %s27, 1
      %p323 = por %p321, %p322
      %p324 = scmp.ne.s32.totalorder %s313, %s314
      %p325 = scmp.eq.s32.totalorder %s27, 0
      %p326 = por %p324, %p325
      %p327 = scmp.ne.s32.totalorder %s313, %s314
      %p328 = scmp.eq.s32.totalorder %s28, 1
      %p329 = por %p327, %p328
      %p331 = scmp.ne.s32.totalorder %s314, %s330
      %p332 = scmp.eq.s32.totalorder %s28, 0
      %p333 = por %p331, %p332
      %p334 = scmp.le.s32.totalorder 1, %s22
      %p335 = scmp.lt.s32.totalorder %s22, 3
      %p336 = pnand %p334, %p335
      %p337 = pneg %p336
      // Predicated region
      $region9: #{tpu_custom_call.1} parent=5 // pred_check
        _
      $region10: #{tpu_custom_call.1} parent=5 // pred_check_branch
        %339 = sbr.rel (%p336) target = $region12
      $region11: #{tpu_custom_call.1} parent=5 // pred_region
        %s340 = ssub.s32 %s22, 1
        // Predicated region
        $region13: #{tpu_custom_call.1} parent=11 // pred_check
          %p341 = pneg %p69
        $region14: #{tpu_custom_call.1} parent=11 // pred_check_branch
          %343 = sbr.rel (%p341) target = $region16
        $region15: #{tpu_custom_call.1} parent=11 // pred_region
          _
        $region16: #{tpu_custom_call.1} parent=11 // pred_fallthru
          _
        // Predicated region
        $region17: #{tpu_custom_call.1} parent=11 // pred_check
          %p344 = pneg %p90
        $region18: #{tpu_custom_call.1} parent=11 // pred_check_branch
          %346 = sbr.rel (%p344) target = $region20
        $region19: #{tpu_custom_call.1} parent=11 // pred_region
          _
        $region20: #{tpu_custom_call.1} parent=11 // pred_fallthru
          _
        // Predicated region
        $region21: #{tpu_custom_call.1} parent=11 // pred_check
          %p347 = pneg %p111
        $region22: #{tpu_custom_call.1} parent=11 // pred_check_branch
          %349 = sbr.rel (%p347) target = $region24
        $region23: #{tpu_custom_call.1} parent=11 // pred_region
          _
        $region24: #{tpu_custom_call.1} parent=11 // pred_fallthru
          _
        // Predicated region
        $region25: #{tpu_custom_call.1} parent=11 // pred_check
          %p350 = pneg %p132
        $region26: #{tpu_custom_call.1} parent=11 // pred_check_branch
          %352 = sbr.rel (%p350) target = $region28
        $region27: #{tpu_custom_call.1} parent=11 // pred_region
          _
        $region28: #{tpu_custom_call.1} parent=11 // pred_fallthru
          _
        // Predicated region
        $region29: #{tpu_custom_call.1} parent=11 // pred_check
          %p353 = pneg %p153
        $region30: #{tpu_custom_call.1} parent=11 // pred_check_branch
          %355 = sbr.rel (%p353) target = $region32
        $region31: #{tpu_custom_call.1} parent=11 // pred_region
          _
        $region32: #{tpu_custom_call.1} parent=11 // pred_fallthru
          _
        // Predicated region
        $region33: #{tpu_custom_call.1} parent=11 // pred_check
          %p356 = pneg %p174
        $region34: #{tpu_custom_call.1} parent=11 // pred_check_branch
          %358 = sbr.rel (%p356) target = $region36
        $region35: #{tpu_custom_call.1} parent=11 // pred_region
          _
        $region36: #{tpu_custom_call.1} parent=11 // pred_fallthru
          _
        // Predicated region
        $region37: #{tpu_custom_call.1} parent=11 // pred_check
          %p359 = pneg %p195
        $region38: #{tpu_custom_call.1} parent=11 // pred_check_branch
          %361 = sbr.rel (%p359) target = $region40
        $region39: #{tpu_custom_call.1} parent=11 // pred_region
          _
        $region40: #{tpu_custom_call.1} parent=11 // pred_fallthru
          _
        // Predicated region
        $region41: #{tpu_custom_call.1} parent=11 // pred_check
          %p362 = pneg %p216
        $region42: #{tpu_custom_call.1} parent=11 // pred_check_branch
          %364 = sbr.rel (%p362) target = $region44
        $region43: #{tpu_custom_call.1} parent=11 // pred_region
          _
        $region44: #{tpu_custom_call.1} parent=11 // pred_fallthru
          _
        // Predicated region
        $region45: #{tpu_custom_call.1} parent=11 // pred_check
          %p365 = pneg %p237
        $region46: #{tpu_custom_call.1} parent=11 // pred_check_branch
          %367 = sbr.rel (%p365) target = $region48
        $region47: #{tpu_custom_call.1} parent=11 // pred_region
          _
        $region48: #{tpu_custom_call.1} parent=11 // pred_fallthru
          _
        // Predicated region
        $region49: #{tpu_custom_call.1} parent=11 // pred_check
          %p368 = pneg %p258
        $region50: #{tpu_custom_call.1} parent=11 // pred_check_branch
          %370 = sbr.rel (%p368) target = $region52
        $region51: #{tpu_custom_call.1} parent=11 // pred_region
          _
        $region52: #{tpu_custom_call.1} parent=11 // pred_fallthru
          _
        // Predicated region
        $region53: #{tpu_custom_call.1} parent=11 // pred_check
          %p371 = pneg %p279
        $region54: #{tpu_custom_call.1} parent=11 // pred_check_branch
          %373 = sbr.rel (%p371) target = $region56
        $region55: #{tpu_custom_call.1} parent=11 // pred_region
          _
        $region56: #{tpu_custom_call.1} parent=11 // pred_fallthru
          _
        // Predicated region
        $region57: #{tpu_custom_call.1} parent=11 // pred_check
          %p374 = pneg %p300
        $region58: #{tpu_custom_call.1} parent=11 // pred_check_branch
          %376 = sbr.rel (%p374) target = $region60
        $region59: #{tpu_custom_call.1} parent=11 // pred_region
          _
        $region60: #{tpu_custom_call.1} parent=11 // pred_fallthru
          _
      $region12: #{tpu_custom_call.1} parent=5 // pred_fallthru
        _
      %p377 = scmp.lt.s32.totalorder %s22, 2
      // Predicated region
      $region61: #{tpu_custom_call.1} parent=5 // pred_check
        %p378 = pneg %p377
      $region62: #{tpu_custom_call.1} parent=5 // pred_check_branch
        %380 = sbr.rel (%p378) target = $region64
      $region63: #{tpu_custom_call.1} parent=5 // pred_region
        // Predicated region
        $region65: #{tpu_custom_call.1} parent=63 // pred_check
          %p381 = pneg %p42
        $region66: #{tpu_custom_call.1} parent=63 // pred_check_branch
          %383 = sbr.rel (%p381) target = $region68
        $region67: #{tpu_custom_call.1} parent=63 // pred_region
          %p384 = scmp.lt.s32.totalorder %s22, 1
          %s385 = scalar_select %p384, %s22, 1
          %s386 = smul.addr %s385, 8
          %s387 = scalar_lea.vmem %s0, %s386
        $region68: #{tpu_custom_call.1} parent=63 // pred_fallthru
          _
      $region64: #{tpu_custom_call.1} parent=5 // pred_fallthru
        _
      %p388 = scmp.le.s32.totalorder 1, %s22
      %p389 = scmp.lt.s32.totalorder %s22, 3
      %p390 = pnand %p388, %p389
      %p391 = pneg %p390
      // Predicated region
      $region69: #{tpu_custom_call.1} parent=5 // pred_check
        _
      $region70: #{tpu_custom_call.1} parent=5 // pred_check_branch
        %393 = sbr.rel (%p390) target = $region72
      $region71: #{tpu_custom_call.1} parent=5 // pred_region
        %s394 = ssub.s32 %s22, 1
        %p395 = scmp.lt.s32.totalorder %s27, 1
        %s396 = scalar_select %p395, %s27, 1
        %s397 = smul.addr %s396, 8
        %s398 = scalar_lea.vmem %s0, %s397
        %p399 = pneg %p48
        %p400 = pneg %p45
        %p401 = pneg %p69
        %p402 = pneg %p66
        %p403 = pneg %p90
        %p404 = pneg %p87
        %p405 = pneg %p111
        %p406 = pneg %p108
        %p407 = pneg %p132
        %p408 = pneg %p129
        %p409 = pneg %p153
        %p410 = pneg %p150
        %p411 = pneg %p174
        %p412 = pneg %p171
        %p413 = pneg %p195
        %p414 = pneg %p192
        %p415 = pneg %p216
        %p416 = pneg %p213
        %p417 = pneg %p237
        %p418 = pneg %p234
        %p419 = pneg %p258
        %p420 = pneg %p255
        %p421 = pneg %p279
        %p422 = pneg %p276
        %p423 = pneg %p300
        %p424 = pneg %p297
        %p425 = pneg %p326
        %p426 = pneg %p323
        %s427 = sand.u32 %s313, 1
        %s428 = scalar_lea.sflag [#allocation4], %s427
        %s429 = sand.u32 %s313, 1
        %s430 = smul.addr %s429, 8
        %s431 = scalar_lea.vmem [#allocation3], %s430
        %p432 = scmp.lt.s32.totalorder %s27, 1
        %s433 = scalar_select %p432, %s27, 1
        %s434 = smul.addr %s433, 8
        %s435 = scalar_lea.vmem %s0, %s434
        %v437 = vld [vmem:[%s435] sm:$0xff]
        %v438 = vld [vmem:[%s1] sm:$0x1]
        %v439 = vld [vmem:[%s2] sm:$0x1]
        %vm440 = vcmask 261120
        %v441 = vsel %vm440, %v437, 0.0
        %442 = vadd.xlane.f32.xlu0 %v441
        %v443 = vpop.xlane.xlu0 %442
        %v444 = vrcp.pop 32.0
        %v445 = vmul.f32 %v443, %v444
        %v446 = vsub.f32 %v437, %v445
        %v447 = vmul.f32 %v446, %v446
        %v448 = vsel %vm440, %v447, 0.0
        %449 = vadd.xlane.f32.xlu0 %v448
        %v450 = vpop.xlane.xlu0 %449
        %v451 = vmul.f32 %v450, %v444
        %v452 = vadd.f32 %v451, 1e-05
        %v453 = vrsqrt.pop %v452
        %v454 = vmul.f32 %v446, %v453
        %v456 = vlaneseq
        %v457 = vshrl.u32 %v456, 7
        %v458 = vsub.s32 0, %v457
        %v459 = vrot.slane %v438, %v458
        %v461 = vmul.f32 %v454, %v459
        %v463 = vlaneseq
        %v464 = vshrl.u32 %v463, 7
        %v465 = vsub.s32 0, %v464
        %v466 = vrot.slane %v439, %v465
        %v468 = vadd.f32 %v461, %v466
        %v469 = vpack.c.bf16 %v468, %v468
        %v470 = vld [vmem:[%s3] sm:$0xf]
        %v471 = vld [vmem:[%s3 + $0x4] sm:$0xf]
        %v472 = vld [vmem:[%s3 + $0x8] sm:$0xf]
        %v473 = vld [vmem:[%s3 + $0xc] sm:$0xf]
        %v474 = vld [vmem:[%s4] sm:$0x1]
        %v476 = vlaneseq
        %v477 = vshrl.u32 %v476, 7
        %v478 = vsub.s32 0, %v477
        %v479 = vrot.slane %v474, %v478
        %v485 = vunpack.c.l.b16 %v470
        %v486 = vunpack.c.l.b16 %v471
        %v487 = vunpack.c.l.b16 %v472
        %v488 = vunpack.c.l.b16 %v473
        %v489 = vpack.c.b16 %v486, %v485
        %v490 = vpack.c.b16 %v488, %v487
        %v494 = vsel %vm440, %v469, 0
        %496 = vmatprep.subr.bf16.mxu0 0
        %497 = vmatpush1.bf16.msra.mxu0 0
        %498 = vmatprep.subr.bf16.mxu0 0
        %499 = vmatpush1.bf16.msra.mxu0 0
        %500 = vmatprep.subr.bf16.mxu0 0
        %501 = vmatpush1.bf16.msra.mxu0 0
        %502 = vmatprep.subr.bf16.mxu0 0
        %503 = vmatpush1.bf16.msra.mxu0 0
        %504 = vmatprep.subr.bf16.mxu0 0
        %505 = vmatpush1.bf16.msra.mxu0 0
        %506 = vmatprep.subr.bf16.mxu0 0
        %507 = vmatpush1.bf16.msra.mxu0 0
        %508 = vmatprep.subr.bf16.mxu0 0
        %509 = vmatpush1.bf16.msra.mxu0 %v490
        %510 = vmatprep.subr.bf16.mxu0 0
        %511 = vmatpush1.bf16.msra.mxu0 %v489
        %512 = vmatprep.subr.bf16.mxu0 0
        %513 = vmatpush2.bf16.msra.mxu0 0
        %514 = vmatprep.subr.bf16.mxu0 0
        %515 = vmatpush2.bf16.msra.mxu0 0
        %516 = vmatprep.subr.bf16.mxu0 0
        %517 = vmatpush2.bf16.msra.mxu0 0
        %518 = vmatprep.subr.bf16.mxu0 0
        %519 = vmatpush2.bf16.msra.mxu0 0
        %520 = vmatprep.subr.bf16.mxu0 0
        %521 = vmatpush2.bf16.msra.mxu0 0
        %522 = vmatprep.subr.bf16.mxu0 0
        %523 = vmatpush2.bf16.msra.mxu0 0
        %524 = vmatprep.subr.bf16.mxu0 0
        %525 = vmatpush2.bf16.msra.mxu0 0
        %526 = vmatprep.subr.bf16.mxu0 0
        %527 = vmatpush2.bf16.msra.mxu0 0
        %528 = vmatprep.mubr.bf16.mxu0 0
        %529 = vmatmul.mubr.bf16.gmra.mxu0 %v494
        %v530 = vpop.f32.mrf.mxu0
        %v531 = vadd.f32 %v479, %v530
        %v532 = vpop.f32.mrf.mxu0
        %v533 = vpop.f32.mrf.mxu0
        %v534 = vpop.f32.mrf.mxu0
        %535 = vdwg.mxu0
        %v536 = vpack.c.bf16 %v531, %v531
        %538 = vrot.lane.b32.xlu0 %v536, 120
        %v539 = vpop.permute.xlu0 %538
        %540 = vrot.lane.b32.xlu0 %v536, 112
        %v541 = vpop.permute.xlu0 %540
        %542 = vrot.lane.b32.xlu0 %v536, 104
        %v543 = vpop.permute.xlu0 %542
        %544 = vrot.lane.b32.xlu0 %v536, 96
        %v545 = vpop.permute.xlu0 %544
        %vm546 = vcmask 64512
        %v548 = vsel %vm546, %v536, 0
        %v551 = vsel %vm546, %v545, 0
        %553 = vmatprep.subr.bf16.mxu0 0
        %554 = vmatpush1.bf16.xpose.msra.mxu0 0
        %555 = vmatprep.subr.bf16.mxu0 0
        %556 = vmatpush1.bf16.xpose.msra.mxu0 0
        %557 = vmatprep.subr.bf16.mxu0 0
        %558 = vmatpush1.bf16.xpose.msra.mxu0 0
        %559 = vmatprep.subr.bf16.mxu0 0
        %560 = vmatpush1.bf16.xpose.msra.mxu0 0
        %561 = vmatprep.subr.bf16.mxu0 0
        %562 = vmatpush1.bf16.xpose.msra.mxu0 0
        %563 = vmatprep.subr.bf16.mxu0 0
        %564 = vmatpush1.bf16.xpose.msra.mxu0 0
        %565 = vmatprep.subr.bf16.mxu0 0
        %566 = vmatpush1.bf16.xpose.msra.mxu0 0
        %567 = vmatprep.subr.bf16.mxu0 0
        %568 = vmatpush1.bf16.xpose.msra.mxu0 %v551
        %569 = vmatprep.subr.bf16.mxu0 0
        %570 = vmatpush2.bf16.xpose.msra.mxu0 0
        %571 = vmatprep.subr.bf16.mxu0 0
        %572 = vmatpush2.bf16.xpose.msra.mxu0 0
        %573 = vmatprep.subr.bf16.mxu0 0
        %574 = vmatpush2.bf16.xpose.msra.mxu0 0
        %575 = vmatprep.subr.bf16.mxu0 0
        %576 = vmatpush2.bf16.xpose.msra.mxu0 0
        %577 = vmatprep.subr.bf16.mxu0 0
        %578 = vmatpush2.bf16.xpose.msra.mxu0 0
        %579 = vmatprep.subr.bf16.mxu0 0
        %580 = vmatpush2.bf16.xpose.msra.mxu0 0
        %581 = vmatprep.subr.bf16.mxu0 0
        %582 = vmatpush2.bf16.xpose.msra.mxu0 0
        %583 = vmatprep.subr.bf16.mxu0 0
        %584 = vmatpush2.bf16.xpose.msra.mxu0 0
        %585 = vmatprep.mubr.bf16.mxu0 0
        %586 = vmatmul.mubr.bf16.gmra.mxu0 %v548
        %v587 = vpop.f32.mrf.mxu0
        %v588 = vadd.f32 0.0, %v587
        %v589 = vpop.f32.mrf.mxu0
        %v590 = vpop.f32.mrf.mxu0
        %v591 = vpop.f32.mrf.mxu0
        %592 = vdwg.mxu0
        %593 = vrot.lane.b32.xlu0 %v539, 96
        %v594 = vpop.permute.xlu0 %593
        %v596 = vsel %vm546, %v539, 0
        %v599 = vsel %vm546, %v594, 0
        %601 = vmatprep.subr.bf16.mxu0 0
        %602 = vmatpush1.bf16.xpose.msra.mxu0 0
        %603 = vmatprep.subr.bf16.mxu0 0
        %604 = vmatpush1.bf16.xpose.msra.mxu0 0
        %605 = vmatprep.subr.bf16.mxu0 0
        %606 = vmatpush1.bf16.xpose.msra.mxu0 0
        %607 = vmatprep.subr.bf16.mxu0 0
        %608 = vmatpush1.bf16.xpose.msra.mxu0 0
        %609 = vmatprep.subr.bf16.mxu0 0
        %610 = vmatpush1.bf16.xpose.msra.mxu0 0
        %611 = vmatprep.subr.bf16.mxu0 0
        %612 = vmatpush1.bf16.xpose.msra.mxu0 0
        %613 = vmatprep.subr.bf16.mxu0 0
        %614 = vmatpush1.bf16.xpose.msra.mxu0 0
        %615 = vmatprep.subr.bf16.mxu0 0
        %616 = vmatpush1.bf16.xpose.msra.mxu0 %v599
        %617 = vmatprep.subr.bf16.mxu0 0
        %618 = vmatpush2.bf16.xpose.msra.mxu0 0
        %619 = vmatprep.subr.bf16.mxu0 0
        %620 = vmatpush2.bf16.xpose.msra.mxu0 0
        %621 = vmatprep.subr.bf16.mxu0 0
        %622 = vmatpush2.bf16.xpose.msra.mxu0 0
        %623 = vmatprep.subr.bf16.mxu0 0
        %624 = vmatpush2.bf16.xpose.msra.mxu0 0
        %625 = vmatprep.subr.bf16.mxu0 0
        %626 = vmatpush2.bf16.xpose.msra.mxu0 0
        %627 = vmatprep.subr.bf16.mxu0 0
        %628 = vmatpush2.bf16.xpose.msra.mxu0 0
        %629 = vmatprep.subr.bf16.mxu0 0
        %630 = vmatpush2.bf16.xpose.msra.mxu0 0
        %631 = vmatprep.subr.bf16.mxu0 0
        %632 = vmatpush2.bf16.xpose.msra.mxu0 0
        %633 = vmatprep.mubr.bf16.mxu0 0
        %634 = vmatmul.mubr.bf16.gmra.mxu0 %v596
        %v635 = vpop.f32.mrf.mxu0
        %v636 = vadd.f32 0.0, %v635
        %v637 = vpop.f32.mrf.mxu0
        %v638 = vpop.f32.mrf.mxu0
        %v639 = vpop.f32.mrf.mxu0
        %640 = vdwg.mxu0
        %641 = vrot.lane.b32.xlu0 %v541, 96
        %v642 = vpop.permute.xlu0 %641
        %v644 = vsel %vm546, %v541, 0
        %v647 = vsel %vm546, %v642, 0
        %649 = vmatprep.subr.bf16.mxu0 0
        %650 = vmatpush1.bf16.xpose.msra.mxu0 0
        %651 = vmatprep.subr.bf16.mxu0 0
        %652 = vmatpush1.bf16.xpose.msra.mxu0 0
        %653 = vmatprep.subr.bf16.mxu0 0
        %654 = vmatpush1.bf16.xpose.msra.mxu0 0
        %655 = vmatprep.subr.bf16.mxu0 0
        %656 = vmatpush1.bf16.xpose.msra.mxu0 0
        %657 = vmatprep.subr.bf16.mxu0 0
        %658 = vmatpush1.bf16.xpose.msra.mxu0 0
        %659 = vmatprep.subr.bf16.mxu0 0
        %660 = vmatpush1.bf16.xpose.msra.mxu0 0
        %661 = vmatprep.subr.bf16.mxu0 0
        %662 = vmatpush1.bf16.xpose.msra.mxu0 0
        %663 = vmatprep.subr.bf16.mxu0 0
        %664 = vmatpush1.bf16.xpose.msra.mxu0 %v647
        %665 = vmatprep.subr.bf16.mxu0 0
        %666 = vmatpush2.bf16.xpose.msra.mxu0 0
        %667 = vmatprep.subr.bf16.mxu0 0
        %668 = vmatpush2.bf16.xpose.msra.mxu0 0
        %669 = vmatprep.subr.bf16.mxu0 0
        %670 = vmatpush2.bf16.xpose.msra.mxu0 0
        %671 = vmatprep.subr.bf16.mxu0 0
        %672 = vmatpush2.bf16.xpose.msra.mxu0 0
        %673 = vmatprep.subr.bf16.mxu0 0
        %674 = vmatpush2.bf16.xpose.msra.mxu0 0
        %675 = vmatprep.subr.bf16.mxu0 0
        %676 = vmatpush2.bf16.xpose.msra.mxu0 0
        %677 = vmatprep.subr.bf16.mxu0 0
        %678 = vmatpush2.bf16.xpose.msra.mxu0 0
        %679 = vmatprep.subr.bf16.mxu0 0
        %680 = vmatpush2.bf16.xpose.msra.mxu0 0
        %681 = vmatprep.mubr.bf16.mxu0 0
        %682 = vmatmul.mubr.bf16.gmra.mxu0 %v644
        %v683 = vpop.f32.mrf.mxu0
        %v684 = vadd.f32 0.0, %v683
        %v685 = vpop.f32.mrf.mxu0
        %v686 = vpop.f32.mrf.mxu0
        %v687 = vpop.f32.mrf.mxu0
        %688 = vdwg.mxu0
        %689 = vrot.lane.b32.xlu0 %v543, 96
        %v690 = vpop.permute.xlu0 %689
        %v692 = vsel %vm546, %v543, 0
        %v695 = vsel %vm546, %v690, 0
        %697 = vmatprep.subr.bf16.mxu0 0
        %698 = vmatpush1.bf16.xpose.msra.mxu0 0
        %699 = vmatprep.subr.bf16.mxu0 0
        %700 = vmatpush1.bf16.xpose.msra.mxu0 0
        %701 = vmatprep.subr.bf16.mxu0 0
        %702 = vmatpush1.bf16.xpose.msra.mxu0 0
        %703 = vmatprep.subr.bf16.mxu0 0
        %704 = vmatpush1.bf16.xpose.msra.mxu0 0
        %705 = vmatprep.subr.bf16.mxu0 0
        %706 = vmatpush1.bf16.xpose.msra.mxu0 0
        %707 = vmatprep.subr.bf16.mxu0 0
        %708 = vmatpush1.bf16.xpose.msra.mxu0 0
        %709 = vmatprep.subr.bf16.mxu0 0
        %710 = vmatpush1.bf16.xpose.msra.mxu0 0
        %711 = vmatprep.subr.bf16.mxu0 0
        %712 = vmatpush1.bf16.xpose.msra.mxu0 %v695
        %713 = vmatprep.subr.bf16.mxu0 0
        %714 = vmatpush2.bf16.xpose.msra.mxu0 0
        %715 = vmatprep.subr.bf16.mxu0 0
        %716 = vmatpush2.bf16.xpose.msra.mxu0 0
        %717 = vmatprep.subr.bf16.mxu0 0
        %718 = vmatpush2.bf16.xpose.msra.mxu0 0
        %719 = vmatprep.subr.bf16.mxu0 0
        %720 = vmatpush2.bf16.xpose.msra.mxu0 0
        %721 = vmatprep.subr.bf16.mxu0 0
        %722 = vmatpush2.bf16.xpose.msra.mxu0 0
        %723 = vmatprep.subr.bf16.mxu0 0
        %724 = vmatpush2.bf16.xpose.msra.mxu0 0
        %725 = vmatprep.subr.bf16.mxu0 0
        %726 = vmatpush2.bf16.xpose.msra.mxu0 0
        %727 = vmatprep.subr.bf16.mxu0 0
        %728 = vmatpush2.bf16.xpose.msra.mxu0 0
        %729 = vmatprep.mubr.bf16.mxu0 0
        %730 = vmatmul.mubr.bf16.gmra.mxu0 %v692
        %v731 = vpop.f32.mrf.mxu0
        %v732 = vadd.f32 0.0, %v731
        %v733 = vpop.f32.mrf.mxu0
        %v734 = vpop.f32.mrf.mxu0
        %v735 = vpop.f32.mrf.mxu0
        %736 = vdwg.mxu0
        %v737 = vsel %vm546, %v588, -inf
        %738 = vmax.xlane.f32.xlu0 %v737
        %v739 = vpop.xlane.xlu0 %738
        %v740 = vsel %vm546, %v636, -inf
        %741 = vmax.xlane.f32.xlu0 %v740
        %v742 = vpop.xlane.xlu0 %741
        %v743 = vsel %vm546, %v684, -inf
        %744 = vmax.xlane.f32.xlu0 %v743
        %v745 = vpop.xlane.xlu0 %744
        %v746 = vsel %vm546, %v732, -inf
        %747 = vmax.xlane.f32.xlu0 %v746
        %v748 = vpop.xlane.xlu0 %747
        %v749 = vsub.f32 %v588, %v739
        %v750 = vsub.f32 %v636, %v742
        %v751 = vsub.f32 %v684, %v745
        %v752 = vsub.f32 %v732, %v748
        %v753 = vmul.f32 %v749, 1.442695
        %v754 = vpow.pop %v753
        %v755 = vmul.f32 %v750, 1.442695
        %v756 = vpow.pop %v755
        %v757 = vmul.f32 %v751, 1.442695
        %v758 = vpow.pop %v757
        %v759 = vmul.f32 %v752, 1.442695
        %v760 = vpow.pop %v759
        %v761 = vsel %vm546, %v754, 0.0
        %762 = vadd.xlane.f32.xlu0 %v761
        %v763 = vpop.xlane.xlu0 %762
        %v764 = vsel %vm546, %v756, 0.0
        %765 = vadd.xlane.f32.xlu0 %v764
        %v766 = vpop.xlane.xlu0 %765
        %v767 = vsel %vm546, %v758, 0.0
        %768 = vadd.xlane.f32.xlu0 %v767
        %v769 = vpop.xlane.xlu0 %768
        %v770 = vsel %vm546, %v760, 0.0
        %771 = vadd.xlane.f32.xlu0 %v770
        %v772 = vpop.xlane.xlu0 %771
        %v773 = vrcp.pop %v763
        %v774 = vrcp.pop %v766
        %v775 = vrcp.pop %v769
        %v776 = vrcp.pop %v772
        %v777 = vmul.f32 %v754, %v773
        %v778 = vmul.f32 %v756, %v774
        %v779 = vmul.f32 %v758, %v775
        %v780 = vmul.f32 %v760, %v776
        %v781 = vpack.c.bf16 %v777, %v777
        %v782 = vpack.c.bf16 %v778, %v778
        %v783 = vpack.c.bf16 %v779, %v779
        %v784 = vpack.c.bf16 %v780, %v780
        %785 = vrot.lane.b32.xlu0 %v536, 64
        %v786 = vpop.permute.xlu0 %785
        %v788 = vsel %vm546, %v781, 0
        %vm790 = vcmask 1043456
        %v792 = vsel %vm790, %v786, 0
        %794 = vmatprep.subr.bf16.mxu0 0
        %795 = vmatpush1.bf16.msra.mxu0 0
        %796 = vmatprep.subr.bf16.mxu0 0
        %797 = vmatpush1.bf16.msra.mxu0 0
        %798 = vmatprep.subr.bf16.mxu0 0
        %799 = vmatpush1.bf16.msra.mxu0 0
        %800 = vmatprep.subr.bf16.mxu0 0
        %801 = vmatpush1.bf16.msra.mxu0 0
        %802 = vmatprep.subr.bf16.mxu0 0
        %803 = vmatpush1.bf16.msra.mxu0 0
        %804 = vmatprep.subr.bf16.mxu0 0
        %805 = vmatpush1.bf16.msra.mxu0 0
        %806 = vmatprep.subr.bf16.mxu0 0
        %807 = vmatpush1.bf16.msra.mxu0 0
        %808 = vmatprep.subr.bf16.mxu0 0
        %809 = vmatpush1.bf16.msra.mxu0 %v792
        %810 = vmatprep.subr.bf16.mxu0 0
        %811 = vmatpush2.bf16.msra.mxu0 0
        %812 = vmatprep.subr.bf16.mxu0 0
        %813 = vmatpush2.bf16.msra.mxu0 0
        %814 = vmatprep.subr.bf16.mxu0 0
        %815 = vmatpush2.bf16.msra.mxu0 0
        %816 = vmatprep.subr.bf16.mxu0 0
        %817 = vmatpush2.bf16.msra.mxu0 0
        %818 = vmatprep.subr.bf16.mxu0 0
        %819 = vmatpush2.bf16.msra.mxu0 0
        %820 = vmatprep.subr.bf16.mxu0 0
        %821 = vmatpush2.bf16.msra.mxu0 0
        %822 = vmatprep.subr.bf16.mxu0 0
        %823 = vmatpush2.bf16.msra.mxu0 0
        %824 = vmatprep.subr.bf16.mxu0 0
        %825 = vmatpush2.bf16.msra.mxu0 0
        %826 = vmatprep.mubr.bf16.mxu0 0
        %827 = vmatmul.mubr.bf16.gmra.mxu0 %v788
        %v828 = vpop.f32.mrf.mxu0
        %v829 = vadd.f32 0.0, %v828
        %v830 = vpop.f32.mrf.mxu0
        %v831 = vpop.f32.mrf.mxu0
        %v832 = vpop.f32.mrf.mxu0
        %833 = vdwg.mxu0
        %834 = vrot.lane.b32.xlu0 %v539, 64
        %v835 = vpop.permute.xlu0 %834
        %v837 = vsel %vm546, %v782, 0
        %v840 = vsel %vm790, %v835, 0
        %842 = vmatprep.subr.bf16.mxu0 0
        %843 = vmatpush1.bf16.msra.mxu0 0
        %844 = vmatprep.subr.bf16.mxu0 0
        %845 = vmatpush1.bf16.msra.mxu0 0
        %846 = vmatprep.subr.bf16.mxu0 0
        %847 = vmatpush1.bf16.msra.mxu0 0
        %848 = vmatprep.subr.bf16.mxu0 0
        %849 = vmatpush1.bf16.msra.mxu0 0
        %850 = vmatprep.subr.bf16.mxu0 0
        %851 = vmatpush1.bf16.msra.mxu0 0
        %852 = vmatprep.subr.bf16.mxu0 0
        %853 = vmatpush1.bf16.msra.mxu0 0
        %854 = vmatprep.subr.bf16.mxu0 0
        %855 = vmatpush1.bf16.msra.mxu0 0
        %856 = vmatprep.subr.bf16.mxu0 0
        %857 = vmatpush1.bf16.msra.mxu0 %v840
        %858 = vmatprep.subr.bf16.mxu0 0
        %859 = vmatpush2.bf16.msra.mxu0 0
        %860 = vmatprep.subr.bf16.mxu0 0
        %861 = vmatpush2.bf16.msra.mxu0 0
        %862 = vmatprep.subr.bf16.mxu0 0
        %863 = vmatpush2.bf16.msra.mxu0 0
        %864 = vmatprep.subr.bf16.mxu0 0
        %865 = vmatpush2.bf16.msra.mxu0 0
        %866 = vmatprep.subr.bf16.mxu0 0
        %867 = vmatpush2.bf16.msra.mxu0 0
        %868 = vmatprep.subr.bf16.mxu0 0
        %869 = vmatpush2.bf16.msra.mxu0 0
        %870 = vmatprep.subr.bf16.mxu0 0
        %871 = vmatpush2.bf16.msra.mxu0 0
        %872 = vmatprep.subr.bf16.mxu0 0
        %873 = vmatpush2.bf16.msra.mxu0 0
        %874 = vmatprep.mubr.bf16.mxu0 0
        %875 = vmatmul.mubr.bf16.gmra.mxu0 %v837
        %v876 = vpop.f32.mrf.mxu0
        %v877 = vadd.f32 0.0, %v876
        %v878 = vpop.f32.mrf.mxu0
        %v879 = vpop.f32.mrf.mxu0
        %v880 = vpop.f32.mrf.mxu0
        %881 = vdwg.mxu0
        %882 = vrot.lane.b32.xlu0 %v541, 64
        %v883 = vpop.permute.xlu0 %882
        %v885 = vsel %vm546, %v783, 0
        %v888 = vsel %vm790, %v883, 0
        %890 = vmatprep.subr.bf16.mxu0 0
        %891 = vmatpush1.bf16.msra.mxu0 0
        %892 = vmatprep.subr.bf16.mxu0 0
        %893 = vmatpush1.bf16.msra.mxu0 0
        %894 = vmatprep.subr.bf16.mxu0 0
        %895 = vmatpush1.bf16.msra.mxu0 0
        %896 = vmatprep.subr.bf16.mxu0 0
        %897 = vmatpush1.bf16.msra.mxu0 0
        %898 = vmatprep.subr.bf16.mxu0 0
        %899 = vmatpush1.bf16.msra.mxu0 0
        %900 = vmatprep.subr.bf16.mxu0 0
        %901 = vmatpush1.bf16.msra.mxu0 0
        %902 = vmatprep.subr.bf16.mxu0 0
        %903 = vmatpush1.bf16.msra.mxu0 0
        %904 = vmatprep.subr.bf16.mxu0 0
        %905 = vmatpush1.bf16.msra.mxu0 %v888
        %906 = vmatprep.subr.bf16.mxu0 0
        %907 = vmatpush2.bf16.msra.mxu0 0
        %908 = vmatprep.subr.bf16.mxu0 0
        %909 = vmatpush2.bf16.msra.mxu0 0
        %910 = vmatprep.subr.bf16.mxu0 0
        %911 = vmatpush2.bf16.msra.mxu0 0
        %912 = vmatprep.subr.bf16.mxu0 0
        %913 = vmatpush2.bf16.msra.mxu0 0
        %914 = vmatprep.subr.bf16.mxu0 0
        %915 = vmatpush2.bf16.msra.mxu0 0
        %916 = vmatprep.subr.bf16.mxu0 0
        %917 = vmatpush2.bf16.msra.mxu0 0
        %918 = vmatprep.subr.bf16.mxu0 0
        %919 = vmatpush2.bf16.msra.mxu0 0
        %920 = vmatprep.subr.bf16.mxu0 0
        %921 = vmatpush2.bf16.msra.mxu0 0
        %922 = vmatprep.mubr.bf16.mxu0 0
        %923 = vmatmul.mubr.bf16.gmra.mxu0 %v885
        %v924 = vpop.f32.mrf.mxu0
        %v925 = vadd.f32 0.0, %v924
        %v926 = vpop.f32.mrf.mxu0
        %v927 = vpop.f32.mrf.mxu0
        %v928 = vpop.f32.mrf.mxu0
        %929 = vdwg.mxu0
        %930 = vrot.lane.b32.xlu0 %v543, 64
        %v931 = vpop.permute.xlu0 %930
        %v933 = vsel %vm546, %v784, 0
        %v936 = vsel %vm790, %v931, 0
        %938 = vmatprep.subr.bf16.mxu0 0
        %939 = vmatpush1.bf16.msra.mxu0 0
        %940 = vmatprep.subr.bf16.mxu0 0
        %941 = vmatpush1.bf16.msra.mxu0 0
        %942 = vmatprep.subr.bf16.mxu0 0
        %943 = vmatpush1.bf16.msra.mxu0 0
        %944 = vmatprep.subr.bf16.mxu0 0
        %945 = vmatpush1.bf16.msra.mxu0 0
        %946 = vmatprep.subr.bf16.mxu0 0
        %947 = vmatpush1.bf16.msra.mxu0 0
        %948 = vmatprep.subr.bf16.mxu0 0
        %949 = vmatpush1.bf16.msra.mxu0 0
        %950 = vmatprep.subr.bf16.mxu0 0
        %951 = vmatpush1.bf16.msra.mxu0 0
        %952 = vmatprep.subr.bf16.mxu0 0
        %953 = vmatpush1.bf16.msra.mxu0 %v936
        %954 = vmatprep.subr.bf16.mxu0 0
        %955 = vmatpush2.bf16.msra.mxu0 0
        %956 = vmatprep.subr.bf16.mxu0 0
        %957 = vmatpush2.bf16.msra.mxu0 0
        %958 = vmatprep.subr.bf16.mxu0 0
        %959 = vmatpush2.bf16.msra.mxu0 0
        %960 = vmatprep.subr.bf16.mxu0 0
        %961 = vmatpush2.bf16.msra.mxu0 0
        %962 = vmatprep.subr.bf16.mxu0 0
        %963 = vmatpush2.bf16.msra.mxu0 0
        %964 = vmatprep.subr.bf16.mxu0 0
        %965 = vmatpush2.bf16.msra.mxu0 0
        %966 = vmatprep.subr.bf16.mxu0 0
        %967 = vmatpush2.bf16.msra.mxu0 0
        %968 = vmatprep.subr.bf16.mxu0 0
        %969 = vmatpush2.bf16.msra.mxu0 0
        %970 = vmatprep.mubr.bf16.mxu0 0
        %971 = vmatmul.mubr.bf16.gmra.mxu0 %v933
        %v972 = vpop.f32.mrf.mxu0
        %v973 = vadd.f32 0.0, %v972
        %v974 = vpop.f32.mrf.mxu0
        %v975 = vpop.f32.mrf.mxu0
        %v976 = vpop.f32.mrf.mxu0
        %977 = vdwg.mxu0
        %978 = vst.msk [vmem:[#allocation2] sm:$0xff] %vm546, %v829
        %980 = vrot.lane.b32.xlu0 %v877, 8
        %v981 = vpop.permute.xlu0 %980
        %vm983 = vcmask 130112
        %984 = vst.msk [vmem:[#allocation2] sm:$0xff] %vm983, %v981
        %986 = vrot.lane.b32.xlu0 %v925, 16
        %v987 = vpop.permute.xlu0 %986
        %vm989 = vcmask 195712
        %990 = vst.msk [vmem:[#allocation2] sm:$0xff] %vm989, %v987
        %992 = vrot.lane.b32.xlu0 %v973, 24
        %v993 = vpop.permute.xlu0 %992
        %vm995 = vcmask 261312
        %996 = vst.msk [vmem:[#allocation2] sm:$0xff] %vm995, %v993
        %v997 = vld [vmem:[#allocation2] sm:$0xff]
        %v998 = vpack.c.bf16 %v997, %v997
        %v999 = vld [vmem:[%s5] sm:$0xf]
        %v1000 = vld [vmem:[%s5 + $0x4] sm:$0xf]
        %v1001 = vld [vmem:[%s5 + $0x8] sm:$0xf]
        %v1002 = vld [vmem:[%s5 + $0xc] sm:$0xf]
        %v1003 = vld [vmem:[%s6] sm:$0x1]
        %v1005 = vlaneseq
        %v1006 = vshrl.u32 %v1005, 7
        %v1007 = vsub.s32 0, %v1006
        %v1008 = vrot.slane %v1003, %v1007
        %v1014 = vunpack.c.l.b16 %v999
        %v1015 = vunpack.c.l.b16 %v1000
        %v1016 = vunpack.c.l.b16 %v1001
        %v1017 = vunpack.c.l.b16 %v1002
        %v1018 = vpack.c.b16 %v1015, %v1014
        %v1019 = vpack.c.b16 %v1017, %v1016
        %v1023 = vsel %vm440, %v998, 0
        %1025 = vmatprep.subr.bf16.mxu0 0
        %1026 = vmatpush1.bf16.msra.mxu0 0
        %1027 = vmatprep.subr.bf16.mxu0 0
        %1028 = vmatpush1.bf16.msra.mxu0 0
        %1029 = vmatprep.subr.bf16.mxu0 0
        %1030 = vmatpush1.bf16.msra.mxu0 0
        %1031 = vmatprep.subr.bf16.mxu0 0
        %1032 = vmatpush1.bf16.msra.mxu0 0
        %1033 = vmatprep.subr.bf16.mxu0 0
        %1034 = vmatpush1.bf16.msra.mxu0 0
        %1035 = vmatprep.subr.bf16.mxu0 0
        %1036 = vmatpush1.bf16.msra.mxu0 0
        %1037 = vmatprep.subr.bf16.mxu0 0
        %1038 = vmatpush1.bf16.msra.mxu0 %v1019
        %1039 = vmatprep.subr.bf16.mxu0 0
        %1040 = vmatpush1.bf16.msra.mxu0 %v1018
        %1041 = vmatprep.subr.bf16.mxu0 0
        %1042 = vmatpush2.bf16.msra.mxu0 0
        %1043 = vmatprep.subr.bf16.mxu0 0
        %1044 = vmatpush2.bf16.msra.mxu0 0
        %1045 = vmatprep.subr.bf16.mxu0 0
        %1046 = vmatpush2.bf16.msra.mxu0 0
        %1047 = vmatprep.subr.bf16.mxu0 0
        %1048 = vmatpush2.bf16.msra.mxu0 0
        %1049 = vmatprep.subr.bf16.mxu0 0
        %1050 = vmatpush2.bf16.msra.mxu0 0
        %1051 = vmatprep.subr.bf16.mxu0 0
        %1052 = vmatpush2.bf16.msra.mxu0 0
        %1053 = vmatprep.subr.bf16.mxu0 0
        %1054 = vmatpush2.bf16.msra.mxu0 0
        %1055 = vmatprep.subr.bf16.mxu0 0
        %1056 = vmatpush2.bf16.msra.mxu0 0
        %1057 = vmatprep.mubr.bf16.mxu0 0
        %1058 = vmatmul.mubr.bf16.gmra.mxu0 %v1023
        %v1059 = vpop.f32.mrf.mxu0
        %v1060 = vadd.f32 %v1008, %v1059
        %v1061 = vpop.f32.mrf.mxu0
        %v1062 = vpop.f32.mrf.mxu0
        %v1063 = vpop.f32.mrf.mxu0
        %1064 = vdwg.mxu0
        %v1065 = vadd.f32 %v437, %v1060
        %v1066 = vld [vmem:[%s7] sm:$0x1]
        %v1067 = vld [vmem:[%s8] sm:$0x1]
        %v1068 = vsel %vm440, %v1065, 0.0
        %1069 = vadd.xlane.f32.xlu0 %v1068
        %v1070 = vpop.xlane.xlu0 %1069
        %v1071 = vmul.f32 %v1070, %v444
        %v1072 = vsub.f32 %v1065, %v1071
        %v1073 = vmul.f32 %v1072, %v1072
        %v1074 = vsel %vm440, %v1073, 0.0
        %1075 = vadd.xlane.f32.xlu0 %v1074
        %v1076 = vpop.xlane.xlu0 %1075
        %v1077 = vmul.f32 %v1076, %v444
        %v1078 = vadd.f32 %v1077, 1e-05
        %v1079 = vrsqrt.pop %v1078
        %v1080 = vmul.f32 %v1072, %v1079
        %v1082 = vlaneseq
        %v1083 = vshrl.u32 %v1082, 7
        %v1084 = vsub.s32 0, %v1083
        %v1085 = vrot.slane %v1066, %v1084
        %v1087 = vmul.f32 %v1080, %v1085
        %v1089 = vlaneseq
        %v1090 = vshrl.u32 %v1089, 7
        %v1091 = vsub.s32 0, %v1090
        %v1092 = vrot.slane %v1067, %v1091
        %v1094 = vadd.f32 %v1087, %v1092
        %v1095 = vpack.c.bf16 %v1094, %v1094
        %v1096 = vld [vmem:[%s9] sm:$0xf]
        %v1097 = vld [vmem:[%s9 + $0x4] sm:$0xf]
        %v1098 = vld [vmem:[%s9 + $0x8] sm:$0xf]
        %v1099 = vld [vmem:[%s9 + $0xc] sm:$0xf]
        %v1100 = vld [vmem:[%s10] sm:$0x1]
        %v1102 = vlaneseq
        %v1103 = vshrl.u32 %v1102, 7
        %v1104 = vsub.s32 0, %v1103
        %v1105 = vrot.slane %v1100, %v1104
        %v1111 = vunpack.c.l.b16 %v1096
        %v1112 = vunpack.c.l.b16 %v1097
        %v1113 = vunpack.c.l.b16 %v1098
        %v1114 = vunpack.c.l.b16 %v1099
        %v1115 = vpack.c.b16 %v1112, %v1111
        %v1116 = vpack.c.b16 %v1114, %v1113
        %v1120 = vsel %vm440, %v1095, 0
        %1122 = vmatprep.subr.bf16.mxu0 0
        %1123 = vmatpush1.bf16.msra.mxu0 0
        %1124 = vmatprep.subr.bf16.mxu0 0
        %1125 = vmatpush1.bf16.msra.mxu0 0
        %1126 = vmatprep.subr.bf16.mxu0 0
        %1127 = vmatpush1.bf16.msra.mxu0 0
        %1128 = vmatprep.subr.bf16.mxu0 0
        %1129 = vmatpush1.bf16.msra.mxu0 0
        %1130 = vmatprep.subr.bf16.mxu0 0
        %1131 = vmatpush1.bf16.msra.mxu0 0
        %1132 = vmatprep.subr.bf16.mxu0 0
        %1133 = vmatpush1.bf16.msra.mxu0 0
        %1134 = vmatprep.subr.bf16.mxu0 0
        %1135 = vmatpush1.bf16.msra.mxu0 %v1116
        %1136 = vmatprep.subr.bf16.mxu0 0
        %1137 = vmatpush1.bf16.msra.mxu0 %v1115
        %1138 = vmatprep.subr.bf16.mxu0 0
        %1139 = vmatpush2.bf16.msra.mxu0 0
        %1140 = vmatprep.subr.bf16.mxu0 0
        %1141 = vmatpush2.bf16.msra.mxu0 0
        %1142 = vmatprep.subr.bf16.mxu0 0
        %1143 = vmatpush2.bf16.msra.mxu0 0
        %1144 = vmatprep.subr.bf16.mxu0 0
        %1145 = vmatpush2.bf16.msra.mxu0 0
        %1146 = vmatprep.subr.bf16.mxu0 0
        %1147 = vmatpush2.bf16.msra.mxu0 0
        %1148 = vmatprep.subr.bf16.mxu0 0
        %1149 = vmatpush2.bf16.msra.mxu0 0
        %1150 = vmatprep.subr.bf16.mxu0 0
        %1151 = vmatpush2.bf16.msra.mxu0 0
        %1152 = vmatprep.subr.bf16.mxu0 0
        %1153 = vmatpush2.bf16.msra.mxu0 0
        %1154 = vmatprep.mubr.bf16.mxu0 0
        %1155 = vmatmul.mubr.bf16.gmra.mxu0 %v1120
        %v1156 = vpop.f32.mrf.mxu0
        %v1157 = vadd.f32 %v1105, %v1156
        %v1158 = vpop.f32.mrf.mxu0
        %v1159 = vpop.f32.mrf.mxu0
        %v1160 = vpop.f32.mrf.mxu0
        %1161 = vdwg.mxu0
        %v1162 = vmul.f32 %v1157, 0.5
        %v1163 = vmul.f32 %v1157, 0.70710677
        %v1164 = verf.f32.pop %v1163
        %v1165 = vadd.f32 %v1164, 1.0
        %v1166 = vmul.f32 %v1162, %v1165
        %v1167 = vpack.c.bf16 %v1166, %v1166
        %v1168 = vld [vmem:[%s11] sm:$0xf]
        %v1169 = vld [vmem:[%s11 + $0x4] sm:$0xf]
        %v1170 = vld [vmem:[%s11 + $0x8] sm:$0xf]
        %v1171 = vld [vmem:[%s11 + $0xc] sm:$0xf]
        %v1172 = vld [vmem:[%s11 + $0x10] sm:$0xf]
        %v1173 = vld [vmem:[%s11 + $0x14] sm:$0xf]
        %v1174 = vld [vmem:[%s11 + $0x18] sm:$0xf]
        %v1175 = vld [vmem:[%s11 + $0x1c] sm:$0xf]
        %v1176 = vld [vmem:[%s11 + $0x20] sm:$0xf]
        %v1177 = vld [vmem:[%s11 + $0x24] sm:$0xf]
        %v1178 = vld [vmem:[%s11 + $0x28] sm:$0xf]
        %v1179 = vld [vmem:[%s11 + $0x2c] sm:$0xf]
        %v1180 = vld [vmem:[%s11 + $0x30] sm:$0xf]
        %v1181 = vld [vmem:[%s11 + $0x34] sm:$0xf]
        %v1182 = vld [vmem:[%s11 + $0x38] sm:$0xf]
        %v1183 = vld [vmem:[%s11 + $0x3c] sm:$0xf]
        %v1184 = vld [vmem:[%s12] sm:$0x1]
        %v1186 = vlaneseq
        %v1187 = vshrl.u32 %v1186, 7
        %v1188 = vsub.s32 0, %v1187
        %v1189 = vrot.slane %v1184, %v1188
        %v1207 = vunpack.c.l.b16 %v1168
        %v1208 = vunpack.c.l.b16 %v1169
        %v1209 = vunpack.c.l.b16 %v1170
        %v1210 = vunpack.c.l.b16 %v1171
        %v1211 = vunpack.c.l.b16 %v1172
        %v1212 = vunpack.c.l.b16 %v1173
        %v1213 = vunpack.c.l.b16 %v1174
        %v1214 = vunpack.c.l.b16 %v1175
        %v1215 = vunpack.c.l.b16 %v1176
        %v1216 = vunpack.c.l.b16 %v1177
        %v1217 = vunpack.c.l.b16 %v1178
        %v1218 = vunpack.c.l.b16 %v1179
        %v1219 = vunpack.c.l.b16 %v1180
        %v1220 = vunpack.c.l.b16 %v1181
        %v1221 = vunpack.c.l.b16 %v1182
        %v1222 = vunpack.c.l.b16 %v1183
        %v1223 = vpack.c.b16 %v1208, %v1207
        %v1224 = vpack.c.b16 %v1210, %v1209
        %v1225 = vpack.c.b16 %v1212, %v1211
        %v1226 = vpack.c.b16 %v1214, %v1213
        %v1227 = vpack.c.b16 %v1216, %v1215
        %v1228 = vpack.c.b16 %v1218, %v1217
        %v1229 = vpack.c.b16 %v1220, %v1219
        %v1230 = vpack.c.b16 %v1222, %v1221
        %1239 = vmatprep.subr.bf16.mxu0 0
        %1240 = vmatpush1.bf16.msra.mxu0 %v1230
        %1241 = vmatprep.subr.bf16.mxu0 0
        %1242 = vmatpush1.bf16.msra.mxu0 %v1229
        %1243 = vmatprep.subr.bf16.mxu0 0
        %1244 = vmatpush1.bf16.msra.mxu0 %v1228
        %1245 = vmatprep.subr.bf16.mxu0 0
        %1246 = vmatpush1.bf16.msra.mxu0 %v1227
        %1247 = vmatprep.subr.bf16.mxu0 0
        %1248 = vmatpush1.bf16.msra.mxu0 %v1226
        %1249 = vmatprep.subr.bf16.mxu0 0
        %1250 = vmatpush1.bf16.msra.mxu0 %v1225
        %1251 = vmatprep.subr.bf16.mxu0 0
        %1252 = vmatpush1.bf16.msra.mxu0 %v1224
        %1253 = vmatprep.subr.bf16.mxu0 0
        %1254 = vmatpush1.bf16.msra.mxu0 %v1223
        %1255 = vmatprep.subr.bf16.mxu0 0
        %1256 = vmatpush2.bf16.msra.mxu0 0
        %1257 = vmatprep.subr.bf16.mxu0 0
        %1258 = vmatpush2.bf16.msra.mxu0 0
        %1259 = vmatprep.subr.bf16.mxu0 0
        %1260 = vmatpush2.bf16.msra.mxu0 0
        %1261 = vmatprep.subr.bf16.mxu0 0
        %1262 = vmatpush2.bf16.msra.mxu0 0
        %1263 = vmatprep.subr.bf16.mxu0 0
        %1264 = vmatpush2.bf16.msra.mxu0 0
        %1265 = vmatprep.subr.bf16.mxu0 0
        %1266 = vmatpush2.bf16.msra.mxu0 0
        %1267 = vmatprep.subr.bf16.mxu0 0
        %1268 = vmatpush2.bf16.msra.mxu0 0
        %1269 = vmatprep.subr.bf16.mxu0 0
        %1270 = vmatpush2.bf16.msra.mxu0 0
        %1271 = vmatprep.mubr.bf16.mxu0 0
        %1272 = vmatmul.mubr.bf16.gmra.mxu0 %v1167
        %v1273 = vpop.f32.mrf.mxu0
        %v1274 = vadd.f32 %v1189, %v1273
        %v1275 = vpop.f32.mrf.mxu0
        %v1276 = vpop.f32.mrf.mxu0
        %v1277 = vpop.f32.mrf.mxu0
        %1278 = vdwg.mxu0
        %v1279 = vadd.f32 %v1065, %v1274
        %1280 = vst.msk [vmem:[%s431] sm:$0xff] %vm440, %v1279
        %s1281 = sand.u32 %s313, 1
        %s1282 = scalar_lea.sflag [#allocation4], %s1281
        %s1283 = sand.u32 %s313, 1
        %s1284 = smul.addr %s1283, 8
        %s1285 = scalar_lea.vmem [#allocation3], %s1284
        // Predicated region
        $region73: #{tpu_custom_call.1} parent=71 // pred_check
          %p1286 = pneg %p323
        $region74: #{tpu_custom_call.1} parent=71 // pred_check_branch
          %1288 = sbr.rel (%p1286) target = $region76
        $region75: #{tpu_custom_call.1} parent=71 // pred_region
          %s1290 = ssub.s32 128, 128
          %1291 = vsyncadd %s1282, %s1290
          %s1292 = smul.addr %s27, 128
          %s1293 = scalar_lea.hbm %s13, %s1292
          %s1295 = sshll.u32 %s1285, 4
          %s1296 = int_to_ptr.vmem [resolvable:$true] %s1295
          %1298 = dma.vmem_to_hbm [thread:$0]  %s1296, 128, %s1293, %s1282
        $region76: #{tpu_custom_call.1} parent=71 // pred_fallthru
          _
      $region72: #{tpu_custom_call.1} parent=5 // pred_fallthru
        _
      %p1299 = scmp.le.s32.totalorder 2, %s22
      // Predicated region
      $region77: #{tpu_custom_call.1} parent=5 // pred_check
        %p1300 = pneg %p1299
      $region78: #{tpu_custom_call.1} parent=5 // pred_check_branch
        %1302 = sbr.rel (%p1300) target = $region80
      $region79: #{tpu_custom_call.1} parent=5 // pred_region
        %s1303 = ssub.s32 %s22, 2
        // Predicated region
        $region81: #{tpu_custom_call.1} parent=79 // pred_check
          %p1304 = pneg %p329
        $region82: #{tpu_custom_call.1} parent=79 // pred_check_branch
          %1306 = sbr.rel (%p1304) target = $region84
        $region83: #{tpu_custom_call.1} parent=79 // pred_region
          %s1307 = sand.u32 %s314, 1
          %s1308 = scalar_lea.sflag [#allocation4], %s1307
          %s1309 = sand.u32 %s314, 1
          %s1310 = smul.addr %s1309, 8
          %s1311 = scalar_lea.vmem [#allocation3], %s1310
          %1312 = dma.done %s1308, 128
        $region84: #{tpu_custom_call.1} parent=79 // pred_fallthru
          _
      $region80: #{tpu_custom_call.1} parent=5 // pred_fallthru
        _
    $region6: #{tpu_custom_call.1} parent=1 // loop_footer
      %s26 = sadd.s32 1, %s22
    $region7: #{tpu_custom_call.1} parent=1 // loop_footer_branch
      %21 = sbr.rel target = $region3
    $region8: #{tpu_custom_call.1} parent=1 // loop_exit
      _
    %1313 = vsyncpa [#allocation4], 1
    %s1314 = scalar_lea.sflag [#allocation4], 1
    %1315 = vsyncpa %s1314, 1

</llo_original>
